<compile_context>
chip_gen: v6e
topology: v6e:2x2x1
jax: 0.10.0
libtpu: 0.0.40
codegen_flags: <defaults>
</compile_context>

<pallas_src>
import numpy as np

import jax
import jax.numpy as jnp
from jax.experimental import pallas as pl
from jax.experimental.pallas import tpu as pltpu

LANE = 128   # every intermediate / output lane dim is padded to one vreg width


# ------------------------------ fused kernel --------------------------------

def _lenet_fused_kernel(x_ref, w1_ref, s1_ref, w2_ref, s2_ref,
                        wf1_ref, sf1_ref, wf2_ref, sf2_ref, wf3_ref, bf3_ref,
                        o_ref, scr1_ref, scr2_ref, feats_ref):
    """One grid step = bb images through the whole network.

    x_ref   : (bb, Hp, Cin*Wp) f32    padded input slab, (h, c*w) layout
    w1_ref  : (kh, Cin*Wp, 256) bf16  conv1 Toeplitz, even cols in lanes 0..127,
                                      odd cols in 128..255 (BN1 scale folded)
    s1_ref  : (1, 128) f32            BN1 shift per pooled column (zero-padded)
    w2_ref  : (kh, 128, 256)  bf16    conv2 Toeplitz (BN2 scale folded)
    s2_ref  : (1, 128) f32
    wf1_ref : (5, 128, 128)   bf16    fc1 per-pooled-row weights (BN3 folded)
    sf1_ref : (1, 128) f32
    wf2_ref : (128, 128)      bf16    fc2 (BN4 folded)
    sf2_ref : (1, 128) f32
    wf3_ref : (128, 128)      bf16    fc3
    bf3_ref : (1, 128) f32            fc3 bias (zero-padded)
    o_ref   : (1, bb, 128) f32        padded logits for this batch block
    scr1_ref: VMEM (28, 128) f32      conv1 pre-(vertical)pool scratch
    scr2_ref: VMEM (10, 128) f32      conv2 pre-(vertical)pool scratch
    feats_ref: VMEM (5*bb, 128) f32   pooled conv2 features, r-major rows
    """
    bb, hp, _ = x_ref.shape
    kh = w1_ref.shape[0]
    ho1 = hp - kh + 1            # 28 : conv1 output height
    hh1 = ho1 // 2               # 14 : after 2x2 maxpool
    ho2 = hh1 - kh + 1           # 10 : conv2 output height
    hh2 = ho2 // 2               # 5  : after 2x2 maxpool
    lane = s1_ref.shape[1]       # 128

    s1 = s1_ref[...]
    s2 = s2_ref[...]

    # ---- conv stages: static unroll over the bb images of this grid step ----
    # (equivalent to a fully-unrolled fori_loop; only one image's accumulators
    #  are live at a time because each image's chain ends in scratch stores).
    for b in range(bb):
        xb = x_ref[b]                                   # (Hp, Cin*Wp) f32

        # conv1 (+BN1 scale folded) + horizontal-pool(max over col parity)
        # + BN1 shift + ReLU, then vertical pool via stride-2 scratch reads.
        acc = jnp.zeros((ho1, 2 * lane), jnp.float32)
        for i in range(kh):
            acc = acc + jnp.dot(xb[i:i + ho1, :].astype(jnp.bfloat16),
                                w1_ref[i], preferred_element_type=jnp.float32)
        h = jnp.maximum(jnp.maximum(acc[:, :lane], acc[:, lane:]) + s1, 0.0)
        scr1_ref[...] = h
        p1 = jnp.maximum(scr1_ref[pl.ds(0, hh1, 2), :],
                         scr1_ref[pl.ds(1, hh1, 2), :])        # (14, 128)

        # conv2 block, same template (input layout already matches).
        acc = jnp.zeros((ho2, 2 * lane), jnp.float32)
        for i in range(kh):
            acc = acc + jnp.dot(p1[i:i + ho2, :].astype(jnp.bfloat16),
                                w2_ref[i], preferred_element_type=jnp.float32)
        h = jnp.maximum(jnp.maximum(acc[:, :lane], acc[:, lane:]) + s2, 0.0)
        scr2_ref[...] = h
        p2 = jnp.maximum(scr2_ref[pl.ds(0, hh2, 2), :],
                         scr2_ref[pl.ds(1, hh2, 2), :])        # (5, 128)

        # Stash the (5, 128) feature slab r-major (row = r*bb + b) so the fc1
        # contraction below is hh2 batched matmuls with M = bb (no reshape).
        for r in range(hh2):
            feats_ref[pl.ds(r * bb + b, 1), :] = p2[r:r + 1, :]

    # ---- fc stack for the whole bb-image block (weights resident in VMEM) ---
    acc = jnp.zeros((bb, lane), jnp.float32)
    for r in range(hh2):
        acc = acc + jnp.dot(
            feats_ref[pl.ds(r * bb, bb), :].astype(jnp.bfloat16),
            wf1_ref[r], preferred_element_type=jnp.float32)
    h = jnp.maximum(acc + sf1_ref[...], 0.0)                   # fc1 + BN3 + ReLU
    h = jnp.dot(h.astype(jnp.bfloat16), wf2_ref[...],
                preferred_element_type=jnp.float32)
    h = jnp.maximum(h + sf2_ref[...], 0.0)                     # fc2 + BN4 + ReLU
    h = jnp.dot(h.astype(jnp.bfloat16), wf3_ref[...],
                preferred_element_type=jnp.float32)
    o_ref[0] = (h + bf3_ref[...]).astype(o_ref.dtype)          # fc3 + bias


def _lenet_pallas(xp, prep, *, bb):
    """xp: (n, Hp, Cin*Wp) with n % bb == 0  ->  (n//bb, bb, 128) padded logits."""
    n, hp, lin = xp.shape
    w1, s1 = prep["c1"]
    w2, s2 = prep["c2"]
    wf1, sf1, wf2, sf2, wf3, bf3 = prep["fc"]
    kh = w1.shape[0]
    ho1 = hp - kh + 1
    ho2 = ho1 // 2 - kh + 1
    hh2 = ho2 // 2
    assert n % bb == 0 and wf1.shape[0] == hh2

    c3 = lambda b: (0, 0, 0)
    c2 = lambda b: (0, 0)
    return pl.pallas_call(
        _lenet_fused_kernel,
        out_shape=jax.ShapeDtypeStruct((n // bb, bb, LANE), jnp.float32),
        grid=(n // bb,),
        in_specs=[
            pl.BlockSpec((bb, hp, lin), lambda b: (b, 0, 0)),
            pl.BlockSpec(w1.shape, c3), pl.BlockSpec(s1.shape, c2),   # resident
            pl.BlockSpec(w2.shape, c3), pl.BlockSpec(s2.shape, c2),   # resident
            pl.BlockSpec(wf1.shape, c3), pl.BlockSpec(sf1.shape, c2), # resident
            pl.BlockSpec(wf2.shape, c2), pl.BlockSpec(sf2.shape, c2), # resident
            pl.BlockSpec(wf3.shape, c2), pl.BlockSpec(bf3.shape, c2), # resident
        ],
        out_specs=pl.BlockSpec((1, bb, LANE), lambda b: (b, 0, 0)),
        scratch_shapes=[
            pltpu.VMEM((ho1, LANE), jnp.float32),        # conv1 pre-pool
            pltpu.VMEM((ho2, LANE), jnp.float32),        # conv2 pre-pool
            pltpu.VMEM((hh2 * bb, LANE), jnp.float32),   # pooled conv2 features
        ],
        compiler_params=pltpu.CompilerParams(
            dimension_semantics=("parallel",)),
    )(xp, w1, s1, w2, s2, wf1, sf1, wf2, sf2, wf3, bf3)


# ----------------------- one-time parameter preprocessing -------------------

def _fold_bn(gamma, beta, mean, var, eps=1e-5):
    gamma, beta, mean, var = (np.asarray(a, np.float32)
                              for a in (gamma, beta, mean, var))
    scale = gamma / np.sqrt(var + eps)
    shift = beta - mean * scale
    return scale, shift


def _conv_toeplitz(w, scale, shift, *, wp, lin):
    """Block-Toeplitz weights: a kh x kw 'valid' conv over an (Hp, Cin*Wp) slab
    becomes kh matmuls.  Even output columns land in lanes [0, 128), odd ones
    in [128, 256) (one concatenated matmul per tap), so the horizontal half of
    the 2x2 maxpool is a vreg-aligned max.  BN scale is folded into the
    weights; the BN shift is returned as a zero-padded (1, 128) lane row."""
    w = np.asarray(w, np.float32)
    cout, cin, kh, kw = w.shape
    wo = wp - kw + 1
    assert wo % 2 == 0, "MaxPool2d(2,2) needs an even conv output width"
    wh = wo // 2
    assert cin * wp <= lin and cout * wh <= LANE
    w = w * np.asarray(scale, np.float32)[:, None, None, None]
    t = np.zeros((kh, lin, 2 * LANE), np.float32)
    for i in range(kh):
        for ci in range(cin):
            for co in range(cout):
                for q in range(wh):
                    for j in range(kw):
                        col = co * wh + q
                        t[i, ci * wp + 2 * q + j, col] = w[co, ci, i, j]
                        t[i, ci * wp + 2 * q + 1 + j, LANE + col] = w[co, ci, i, j]
    sh = np.zeros((1, LANE), np.float32)
    sh[0, :cout * wh] = np.repeat(np.asarray(shift, np.float32), wh)
    return jnp.asarray(t, jnp.bfloat16), jnp.asarray(sh)


def prepare_params(p, D_in=(1, 28, 28), H=84, D_out=10):
    """Fold BN into weights, build concatenated even/odd block-Toeplitz conv
    weights, restructure fc1 to per-pooled-row weights, pad every lane dim to
    128 (zero rows/cols/shifts) and cast matmul weights to bf16.  Runs once."""
    cin, hin, win = D_in
    assert (hin, win) == (28, 28), "LeNet's fc1 hard-codes a 28x28 input"
    assert H <= LANE and D_out <= LANE

    s1, t1 = _fold_bn(*p["bn1"])
    s2, t2 = _fold_bn(*p["bn2"])
    s3, t3 = _fold_bn(*p["bn3"])
    s4, t4 = _fold_bn(*p["bn4"])

    wp1 = win + 4                      # 32 : conv1 padded width
    wh1 = (wp1 - 5 + 1) // 2           # 14 : conv1 pooled width
    wh2 = (wh1 - 5 + 1) // 2           # 5  : conv2 pooled width
    cout2 = np.asarray(p["w_conv2"]).shape[0]          # 16

    c1 = _conv_toeplitz(p["w_conv1"], s1, t1, wp=wp1, lin=cin * wp1)
    c2 = _conv_toeplitz(p["w_conv2"], s2, t2, wp=wh1, lin=LANE)

    # fc1: (120, 400) restructured to (5, 128, 128): contraction over the
    # pooled conv2 output (rows h = 0..4, lanes c*5 + w, zero-padded to 128)
    # needs no flatten inside the kernel.  BN3 scale folded into the columns.
    w_fc1 = np.asarray(p["w_fc1"], np.float32)          # (120, 400), torch (c,h,w) flatten
    nf1 = w_fc1.shape[0]                                 # 120
    assert w_fc1.shape[1] == cout2 * wh2 * wh2 and nf1 <= LANE
    wf1 = np.zeros((wh2, LANE, LANE), np.float32)
    for h_ in range(wh2):
        for c_ in range(cout2):
            for w_ in range(wh2):
                wf1[h_, c_ * wh2 + w_, :nf1] = w_fc1[:, c_ * wh2 * wh2 + h_ * wh2 + w_]
    wf1[:, :, :nf1] *= s3[None, None, :]
    sf1 = np.zeros((1, LANE), np.float32); sf1[0, :nf1] = t3

    w_fc2 = np.asarray(p["w_fc2"], np.float32)          # (H, 120)
    wf2 = np.zeros((LANE, LANE), np.float32)
    wf2[:nf1, :H] = w_fc2.T * s4[None, :]
    sf2 = np.zeros((1, LANE), np.float32); sf2[0, :H] = t4

    w_fc3 = np.asarray(p["w_fc3"], np.float32)          # (D_out, H)
    wf3 = np.zeros((LANE, LANE), np.float32)
    wf3[:H, :D_out] = w_fc3.T
    bf3 = np.zeros((1, LANE), np.float32)
    bf3[0, :D_out] = np.asarray(p["b_fc3"], np.float32)

    return {
        "c1": c1,
        "c2": c2,
        "fc": (jnp.asarray(wf1, jnp.bfloat16), jnp.asarray(sf1),
               jnp.asarray(wf2, jnp.bfloat16), jnp.asarray(sf2),
               jnp.asarray(wf3, jnp.bfloat16), jnp.asarray(bf3)),
    }


# ------------------------------- forward pass --------------------------------

def lenet_forward(x, prep, D_in=(1, 28, 28), D_out=10, block_b=8):
    cin, hin, win = D_in
    x = x.reshape(-1, cin, hin, win).astype(jnp.float32)
    n = x.shape[0]

    # Per-grid-step image block: amortizes the ~0.35us/step pipeline overhead
    # while keeping the grid extent >= 2 (both v7x TensorCores get work).
    bb = max(1, min(block_b, n // 2)) if n >= 2 else 1
    n_pad = ((n + bb - 1) // bb) * bb
    if n_pad != n:
        x = jnp.pad(x, ((0, n_pad - n), (0, 0), (0, 0), (0, 0)))

    # conv1's padding=2 folded into the slab; layout (H, Cin*W): the
    # channel*width product sits on the lane axis (no transposes later).
    xp = jnp.pad(x, ((0, 0), (0, 0), (2, 2), (2, 2)))
    xp = xp.transpose(0, 2, 1, 3).reshape(n_pad, hin + 4, cin * (win + 4))

    out = _lenet_pallas(xp, prep, bb=bb)            # (n_pad//bb, bb, 128)
    return out.reshape(n_pad, LANE)[:n, :D_out]


# ---------------------------- pure-JAX reference -----------------------------

def lenet_reference(x, p, D_in=(1, 28, 28)):
    hi = jax.lax.Precision.HIGHEST
    x = x.reshape(-1, D_in[0], D_in[1], D_in[2]).astype(jnp.float32)

    def bn(y, params):
        g, b, m, v = params
        shape = [1] * y.ndim
        shape[1] = -1
        g, b, m, v = (a.reshape(shape) for a in (g, b, m, v))
        return (y - m) / jnp.sqrt(v + 1e-5) * g + b

    def pool(y):
        n, c, h, w = y.shape
        return jnp.max(y.reshape(n, c, h // 2, 2, w // 2, 2), axis=(3, 5))

    y = jax.lax.conv_general_dilated(x, p["w_conv1"], (1, 1), ((2, 2), (2, 2)),
                                     dimension_numbers=("NCHW", "OIHW", "NCHW"),
                                     precision=hi)
    y = pool(jnp.maximum(bn(y, p["bn1"]), 0.0))
    y = jax.lax.conv_general_dilated(y, p["w_conv2"], (1, 1), ((0, 0), (0, 0)),
                                     dimension_numbers=("NCHW", "OIHW", "NCHW"),
                                     precision=hi)
    y = pool(jnp.maximum(bn(y, p["bn2"]), 0.0))
    y = y.reshape(y.shape[0], -1)
    y = jnp.maximum(bn(y @ p["w_fc1"].T, p["bn3"]), 0.0)
    y = jnp.maximum(bn(y @ p["w_fc2"].T, p["bn4"]), 0.0)
    return y @ p["w_fc3"].T + p["b_fc3"]


# ---------------------------------- params -----------------------------------

def make_params(key, D_in=(1, 28, 28), H=84, D_out=10):
    ks = jax.random.split(key, 12)

    def bn(k, c):
        k1, k2, k3, k4 = jax.random.split(k, 4)
        return (1.0 + 0.1 * jax.random.normal(k1, (c,), jnp.float32),   # gamma
                0.05 * jax.random.normal(k2, (c,), jnp.float32),        # beta
                0.05 * jax.random.normal(k3, (c,), jnp.float32),        # mean
                1.0 + 0.1 * jnp.abs(jax.random.normal(k4, (c,), jnp.float32)))  # var

    p = {}
    p["w_conv1"] = 0.1 * jax.random.normal(ks[0], (6, D_in[0], 5, 5), jnp.float32)
    p["bn1"] = bn(ks[1], 6)
    p["w_conv2"] = 0.1 * jax.random.normal(ks[2], (16, 6, 5, 5), jnp.float32)
    p["bn2"] = bn(ks[3], 16)
    p["w_fc1"] = 0.05 * jax.random.normal(ks[4], (120, 16 * 5 * 5), jnp.float32)
    p["bn3"] = bn(ks[5], 120)
    p["w_fc2"] = 0.05 * jax.random.normal(ks[6], (H, 120), jnp.float32)
    p["bn4"] = bn(ks[7], H)
    p["w_fc3"] = 0.05 * jax.random.normal(ks[8], (D_out, H), jnp.float32)
    p["b_fc3"] = 0.05 * jax.random.normal(ks[9], (D_out,), jnp.float32)
    return p


# ----------------------------------- main -------------------------------------

if __name__ == "__main__":
    key = jax.random.PRNGKey(0)
    kx, kp = jax.random.split(key)

    N = 2
    x = jax.random.normal(kx, (N, 1, 28, 28), jnp.float32)
    params = make_params(kp)
    prep = prepare_params(params)      # one-time: BN fold, Toeplitz, padding, bf16

    fwd = jax.jit(lenet_forward)
    out = jax.block_until_ready(fwd(x, prep))
    assert out.shape == (N, 10) and out.dtype == jnp.float32

    ref = jax.block_until_ready(lenet_reference(x, params))
    # bf16 weights + bf16 matmul inputs (f32 accumulation) vs. a HIGHEST-precision
    # f32 reference: allow a slightly wider absolute tolerance than pure f32.
    err = float(jnp.max(jnp.abs(out - ref)))
    assert jnp.allclose(out, ref, rtol=5e-2, atol=1.5e-2), f"max abs diff {err}"

    print("KERNEL_OK")
</pallas_src>

<mosaic_0001>
module attributes {stable_mosaic.version = 11 : i64} {
  func.func @_lenet_fused_kernel(%arg0: i32, %arg1: memref<1x32x32xf32, #tpu.memory_space<vmem>>, %arg2: memref<5x32x256xbf16, #tpu.memory_space<vmem>>, %arg3: memref<1x128xf32, #tpu.memory_space<vmem>>, %arg4: memref<5x128x256xbf16, #tpu.memory_space<vmem>>, %arg5: memref<1x128xf32, #tpu.memory_space<vmem>>, %arg6: memref<5x128x128xbf16, #tpu.memory_space<vmem>>, %arg7: memref<1x128xf32, #tpu.memory_space<vmem>>, %arg8: memref<128x128xbf16, #tpu.memory_space<vmem>>, %arg9: memref<1x128xf32, #tpu.memory_space<vmem>>, %arg10: memref<128x128xbf16, #tpu.memory_space<vmem>>, %arg11: memref<1x128xf32, #tpu.memory_space<vmem>>, %arg12: memref<1x1x128xf32, #tpu.memory_space<vmem>>, %arg13: memref<28x128xf32, #tpu.memory_space<vmem>>, %arg14: memref<10x128xf32, #tpu.memory_space<vmem>>, %arg15: memref<5x128xf32, #tpu.memory_space<vmem>>) attributes {dimension_semantics = [#tpu.dimension_semantics<parallel>], iteration_bounds = array<i64: 2>, scalar_prefetch = 0 : i64, scratch_operands = 3 : i64, tpu.core_type = #tpu.core_type<tc>, window_params = [{transform_indices = @transform_0, window_bounds = array<i64: 1, 32, 32>}, {pipeline_mode = #tpu.pipeline_mode<synchronous>, transform_indices = @transform_1, window_bounds = array<i64: 5, 32, 256>}, {pipeline_mode = #tpu.pipeline_mode<synchronous>, transform_indices = @transform_2, window_bounds = array<i64: 1, 128>}, {pipeline_mode = #tpu.pipeline_mode<synchronous>, transform_indices = @transform_3, window_bounds = array<i64: 5, 128, 256>}, {pipeline_mode = #tpu.pipeline_mode<synchronous>, transform_indices = @transform_4, window_bounds = array<i64: 1, 128>}, {pipeline_mode = #tpu.pipeline_mode<synchronous>, transform_indices = @transform_5, window_bounds = array<i64: 5, 128, 128>}, {pipeline_mode = #tpu.pipeline_mode<synchronous>, transform_indices = @transform_6, window_bounds = array<i64: 1, 128>}, {pipeline_mode = #tpu.pipeline_mode<synchronous>, transform_indices = @transform_7, window_bounds = array<i64: 128, 128>}, {pipeline_mode = #tpu.pipeline_mode<synchronous>, transform_indices = @transform_8, window_bounds = array<i64: 1, 128>}, {pipeline_mode = #tpu.pipeline_mode<synchronous>, transform_indices = @transform_9, window_bounds = array<i64: 128, 128>}, {pipeline_mode = #tpu.pipeline_mode<synchronous>, transform_indices = @transform_10, window_bounds = array<i64: 1, 128>}, {transform_indices = @transform_11, window_bounds = array<i64: 1, 1, 128>}]} {
    %c0 = arith.constant 0 : index
    %c0_0 = arith.constant 0 : index
    %0 = vector.load %arg3[%c0, %c0_0] : memref<1x128xf32, #tpu.memory_space<vmem>>, vector<1x128xf32>
    %c0_1 = arith.constant 0 : index
    %c0_2 = arith.constant 0 : index
    %1 = vector.load %arg5[%c0_1, %c0_2] : memref<1x128xf32, #tpu.memory_space<vmem>>, vector<1x128xf32>
    %c0_3 = arith.constant 0 : index
    %c0_4 = arith.constant 0 : index
    %c0_5 = arith.constant 0 : index
    %2 = vector.load %arg1[%c0_3, %c0_4, %c0_5] : memref<1x32x32xf32, #tpu.memory_space<vmem>>, vector<1x32x32xf32>
    %3 = vector.shape_cast %2 : vector<1x32x32xf32> to vector<32x32xf32>
    %cst = arith.constant 0.000000e+00 : f32
    %4 = vector.broadcast %cst : f32 to vector<28x256xf32>
    %5 = vector.extract_strided_slice %3 {offsets = [0, 0], sizes = [28, 32], strides = [1, 1]} : vector<32x32xf32> to vector<28x32xf32>
    %6 = arith.truncf %5 : vector<28x32xf32> to vector<28x32xbf16>
    %c0_6 = arith.constant 0 : index
    %c0_7 = arith.constant 0 : index
    %c0_8 = arith.constant 0 : index
    %7 = vector.load %arg2[%c0_6, %c0_7, %c0_8] : memref<5x32x256xbf16, #tpu.memory_space<vmem>>, vector<1x32x256xbf16>
    %8 = vector.shape_cast %7 : vector<1x32x256xbf16> to vector<32x256xbf16>
    %cst_9 = arith.constant dense<0.000000e+00> : vector<28x256xf32>
    %9 = tpu.matmul %6, %8, %cst_9 {dimension_numbers = #tpu.dot_dimension_numbers<[1], [0], [0], [1], [0, 0, 1, 1], [], []>} : vector<28x32xbf16>, vector<32x256xbf16>, vector<28x256xf32> -> vector<28x256xf32>
    %10 = arith.addf %4, %9 : vector<28x256xf32>
    %11 = vector.extract_strided_slice %3 {offsets = [1, 0], sizes = [28, 32], strides = [1, 1]} : vector<32x32xf32> to vector<28x32xf32>
    %12 = arith.truncf %11 : vector<28x32xf32> to vector<28x32xbf16>
    %c1 = arith.constant 1 : index
    %c0_10 = arith.constant 0 : index
    %c0_11 = arith.constant 0 : index
    %13 = vector.load %arg2[%c1, %c0_10, %c0_11] : memref<5x32x256xbf16, #tpu.memory_space<vmem>>, vector<1x32x256xbf16>
    %14 = vector.shape_cast %13 : vector<1x32x256xbf16> to vector<32x256xbf16>
    %cst_12 = arith.constant dense<0.000000e+00> : vector<28x256xf32>
    %15 = tpu.matmul %12, %14, %cst_12 {dimension_numbers = #tpu.dot_dimension_numbers<[1], [0], [0], [1], [0, 0, 1, 1], [], []>} : vector<28x32xbf16>, vector<32x256xbf16>, vector<28x256xf32> -> vector<28x256xf32>
    %16 = arith.addf %10, %15 : vector<28x256xf32>
    %17 = vector.extract_strided_slice %3 {offsets = [2, 0], sizes = [28, 32], strides = [1, 1]} : vector<32x32xf32> to vector<28x32xf32>
    %18 = arith.truncf %17 : vector<28x32xf32> to vector<28x32xbf16>
    %c2 = arith.constant 2 : index
    %c0_13 = arith.constant 0 : index
    %c0_14 = arith.constant 0 : index
    %19 = vector.load %arg2[%c2, %c0_13, %c0_14] : memref<5x32x256xbf16, #tpu.memory_space<vmem>>, vector<1x32x256xbf16>
    %20 = vector.shape_cast %19 : vector<1x32x256xbf16> to vector<32x256xbf16>
    %cst_15 = arith.constant dense<0.000000e+00> : vector<28x256xf32>
    %21 = tpu.matmul %18, %20, %cst_15 {dimension_numbers = #tpu.dot_dimension_numbers<[1], [0], [0], [1], [0, 0, 1, 1], [], []>} : vector<28x32xbf16>, vector<32x256xbf16>, vector<28x256xf32> -> vector<28x256xf32>
    %22 = arith.addf %16, %21 : vector<28x256xf32>
    %23 = vector.extract_strided_slice %3 {offsets = [3, 0], sizes = [28, 32], strides = [1, 1]} : vector<32x32xf32> to vector<28x32xf32>
    %24 = arith.truncf %23 : vector<28x32xf32> to vector<28x32xbf16>
    %c3 = arith.constant 3 : index
    %c0_16 = arith.constant 0 : index
    %c0_17 = arith.constant 0 : index
    %25 = vector.load %arg2[%c3, %c0_16, %c0_17] : memref<5x32x256xbf16, #tpu.memory_space<vmem>>, vector<1x32x256xbf16>
    %26 = vector.shape_cast %25 : vector<1x32x256xbf16> to vector<32x256xbf16>
    %cst_18 = arith.constant dense<0.000000e+00> : vector<28x256xf32>
    %27 = tpu.matmul %24, %26, %cst_18 {dimension_numbers = #tpu.dot_dimension_numbers<[1], [0], [0], [1], [0, 0, 1, 1], [], []>} : vector<28x32xbf16>, vector<32x256xbf16>, vector<28x256xf32> -> vector<28x256xf32>
    %28 = arith.addf %22, %27 : vector<28x256xf32>
    %29 = vector.extract_strided_slice %3 {offsets = [4, 0], sizes = [28, 32], strides = [1, 1]} : vector<32x32xf32> to vector<28x32xf32>
    %30 = arith.truncf %29 : vector<28x32xf32> to vector<28x32xbf16>
    %c4 = arith.constant 4 : index
    %c0_19 = arith.constant 0 : index
    %c0_20 = arith.constant 0 : index
    %31 = vector.load %arg2[%c4, %c0_19, %c0_20] : memref<5x32x256xbf16, #tpu.memory_space<vmem>>, vector<1x32x256xbf16>
    %32 = vector.shape_cast %31 : vector<1x32x256xbf16> to vector<32x256xbf16>
    %cst_21 = arith.constant dense<0.000000e+00> : vector<28x256xf32>
    %33 = tpu.matmul %30, %32, %cst_21 {dimension_numbers = #tpu.dot_dimension_numbers<[1], [0], [0], [1], [0, 0, 1, 1], [], []>} : vector<28x32xbf16>, vector<32x256xbf16>, vector<28x256xf32> -> vector<28x256xf32>
    %34 = arith.addf %28, %33 : vector<28x256xf32>
    %35 = vector.extract_strided_slice %34 {offsets = [0, 0], sizes = [28, 128], strides = [1, 1]} : vector<28x256xf32> to vector<28x128xf32>
    %36 = vector.extract_strided_slice %34 {offsets = [0, 128], sizes = [28, 128], strides = [1, 1]} : vector<28x256xf32> to vector<28x128xf32>
    %37 = arith.maximumf %35, %36 : vector<28x128xf32>
    %38 = vector.broadcast %0 : vector<1x128xf32> to vector<28x128xf32>
    %39 = arith.addf %37, %38 : vector<28x128xf32>
    %cst_22 = arith.constant 0.000000e+00 : f32
    %40 = vector.broadcast %cst_22 : f32 to vector<28x128xf32>
    %41 = arith.maximumf %39, %40 : vector<28x128xf32>
    %c0_23 = arith.constant 0 : index
    %c0_24 = arith.constant 0 : index
    %42 = vector.load %arg13[%c0_23, %c0_24] : memref<28x128xf32, #tpu.memory_space<vmem>>, vector<28x128xf32>
    tpu.vector_store %arg13[%c0_23, %c0_24], %41 {strides = array<i32>} : memref<28x128xf32, #tpu.memory_space<vmem>>, vector<28x128xf32>,
    %c0_25 = arith.constant 0 : index
    %c0_26 = arith.constant 0 : index
    %43 = tpu.strided_load %arg13[%c0_25, %c0_26] {strides = array<i32: 2, 1>} : memref<28x128xf32, #tpu.memory_space<vmem>>, vector<14x128xf32>
    %c1_27 = arith.constant 1 : index
    %c0_28 = arith.constant 0 : index
    %44 = tpu.strided_load %arg13[%c1_27, %c0_28] {strides = array<i32: 2, 1>} : memref<28x128xf32, #tpu.memory_space<vmem>>, vector<14x128xf32>
    %45 = arith.maximumf %43, %44 : vector<14x128xf32>
    %cst_29 = arith.constant 0.000000e+00 : f32
    %46 = vector.broadcast %cst_29 : f32 to vector<10x256xf32>
    %47 = vector.extract_strided_slice %45 {offsets = [0, 0], sizes = [10, 128], strides = [1, 1]} : vector<14x128xf32> to vector<10x128xf32>
    %48 = arith.truncf %47 : vector<10x128xf32> to vector<10x128xbf16>
    %c0_30 = arith.constant 0 : index
    %c0_31 = arith.constant 0 : index
    %c0_32 = arith.constant 0 : index
    %49 = vector.load %arg4[%c0_30, %c0_31, %c0_32] : memref<5x128x256xbf16, #tpu.memory_space<vmem>>, vector<1x128x256xbf16>
    %50 = vector.shape_cast %49 : vector<1x128x256xbf16> to vector<128x256xbf16>
    %cst_33 = arith.constant dense<0.000000e+00> : vector<10x256xf32>
    %51 = tpu.matmul %48, %50, %cst_33 {dimension_numbers = #tpu.dot_dimension_numbers<[1], [0], [0], [1], [0, 0, 1, 1], [], []>} : vector<10x128xbf16>, vector<128x256xbf16>, vector<10x256xf32> -> vector<10x256xf32>
    %52 = arith.addf %46, %51 : vector<10x256xf32>
    %53 = vector.extract_strided_slice %45 {offsets = [1, 0], sizes = [10, 128], strides = [1, 1]} : vector<14x128xf32> to vector<10x128xf32>
    %54 = arith.truncf %53 : vector<10x128xf32> to vector<10x128xbf16>
    %c1_34 = arith.constant 1 : index
    %c0_35 = arith.constant 0 : index
    %c0_36 = arith.constant 0 : index
    %55 = vector.load %arg4[%c1_34, %c0_35, %c0_36] : memref<5x128x256xbf16, #tpu.memory_space<vmem>>, vector<1x128x256xbf16>
    %56 = vector.shape_cast %55 : vector<1x128x256xbf16> to vector<128x256xbf16>
    %cst_37 = arith.constant dense<0.000000e+00> : vector<10x256xf32>
    %57 = tpu.matmul %54, %56, %cst_37 {dimension_numbers = #tpu.dot_dimension_numbers<[1], [0], [0], [1], [0, 0, 1, 1], [], []>} : vector<10x128xbf16>, vector<128x256xbf16>, vector<10x256xf32> -> vector<10x256xf32>
    %58 = arith.addf %52, %57 : vector<10x256xf32>
    %59 = vector.extract_strided_slice %45 {offsets = [2, 0], sizes = [10, 128], strides = [1, 1]} : vector<14x128xf32> to vector<10x128xf32>
    %60 = arith.truncf %59 : vector<10x128xf32> to vector<10x128xbf16>
    %c2_38 = arith.constant 2 : index
    %c0_39 = arith.constant 0 : index
    %c0_40 = arith.constant 0 : index
    %61 = vector.load %arg4[%c2_38, %c0_39, %c0_40] : memref<5x128x256xbf16, #tpu.memory_space<vmem>>, vector<1x128x256xbf16>
    %62 = vector.shape_cast %61 : vector<1x128x256xbf16> to vector<128x256xbf16>
    %cst_41 = arith.constant dense<0.000000e+00> : vector<10x256xf32>
    %63 = tpu.matmul %60, %62, %cst_41 {dimension_numbers = #tpu.dot_dimension_numbers<[1], [0], [0], [1], [0, 0, 1, 1], [], []>} : vector<10x128xbf16>, vector<128x256xbf16>, vector<10x256xf32> -> vector<10x256xf32>
    %64 = arith.addf %58, %63 : vector<10x256xf32>
    %65 = vector.extract_strided_slice %45 {offsets = [3, 0], sizes = [10, 128], strides = [1, 1]} : vector<14x128xf32> to vector<10x128xf32>
    %66 = arith.truncf %65 : vector<10x128xf32> to vector<10x128xbf16>
    %c3_42 = arith.constant 3 : index
    %c0_43 = arith.constant 0 : index
    %c0_44 = arith.constant 0 : index
    %67 = vector.load %arg4[%c3_42, %c0_43, %c0_44] : memref<5x128x256xbf16, #tpu.memory_space<vmem>>, vector<1x128x256xbf16>
    %68 = vector.shape_cast %67 : vector<1x128x256xbf16> to vector<128x256xbf16>
    %cst_45 = arith.constant dense<0.000000e+00> : vector<10x256xf32>
    %69 = tpu.matmul %66, %68, %cst_45 {dimension_numbers = #tpu.dot_dimension_numbers<[1], [0], [0], [1], [0, 0, 1, 1], [], []>} : vector<10x128xbf16>, vector<128x256xbf16>, vector<10x256xf32> -> vector<10x256xf32>
    %70 = arith.addf %64, %69 : vector<10x256xf32>
    %71 = vector.extract_strided_slice %45 {offsets = [4, 0], sizes = [10, 128], strides = [1, 1]} : vector<14x128xf32> to vector<10x128xf32>
    %72 = arith.truncf %71 : vector<10x128xf32> to vector<10x128xbf16>
    %c4_46 = arith.constant 4 : index
    %c0_47 = arith.constant 0 : index
    %c0_48 = arith.constant 0 : index
    %73 = vector.load %arg4[%c4_46, %c0_47, %c0_48] : memref<5x128x256xbf16, #tpu.memory_space<vmem>>, vector<1x128x256xbf16>
    %74 = vector.shape_cast %73 : vector<1x128x256xbf16> to vector<128x256xbf16>
    %cst_49 = arith.constant dense<0.000000e+00> : vector<10x256xf32>
    %75 = tpu.matmul %72, %74, %cst_49 {dimension_numbers = #tpu.dot_dimension_numbers<[1], [0], [0], [1], [0, 0, 1, 1], [], []>} : vector<10x128xbf16>, vector<128x256xbf16>, vector<10x256xf32> -> vector<10x256xf32>
    %76 = arith.addf %70, %75 : vector<10x256xf32>
    %77 = vector.extract_strided_slice %76 {offsets = [0, 0], sizes = [10, 128], strides = [1, 1]} : vector<10x256xf32> to vector<10x128xf32>
    %78 = vector.extract_strided_slice %76 {offsets = [0, 128], sizes = [10, 128], strides = [1, 1]} : vector<10x256xf32> to vector<10x128xf32>
    %79 = arith.maximumf %77, %78 : vector<10x128xf32>
    %80 = vector.broadcast %1 : vector<1x128xf32> to vector<10x128xf32>
    %81 = arith.addf %79, %80 : vector<10x128xf32>
    %cst_50 = arith.constant 0.000000e+00 : f32
    %82 = vector.broadcast %cst_50 : f32 to vector<10x128xf32>
    %83 = arith.maximumf %81, %82 : vector<10x128xf32>
    %c0_51 = arith.constant 0 : index
    %c0_52 = arith.constant 0 : index
    %84 = vector.load %arg14[%c0_51, %c0_52] : memref<10x128xf32, #tpu.memory_space<vmem>>, vector<10x128xf32>
    tpu.vector_store %arg14[%c0_51, %c0_52], %83 {strides = array<i32>} : memref<10x128xf32, #tpu.memory_space<vmem>>, vector<10x128xf32>,
    %c0_53 = arith.constant 0 : index
    %c0_54 = arith.constant 0 : index
    %85 = tpu.strided_load %arg14[%c0_53, %c0_54] {strides = array<i32: 2, 1>} : memref<10x128xf32, #tpu.memory_space<vmem>>, vector<5x128xf32>
    %c1_55 = arith.constant 1 : index
    %c0_56 = arith.constant 0 : index
    %86 = tpu.strided_load %arg14[%c1_55, %c0_56] {strides = array<i32: 2, 1>} : memref<10x128xf32, #tpu.memory_space<vmem>>, vector<5x128xf32>
    %87 = arith.maximumf %85, %86 : vector<5x128xf32>
    %88 = vector.extract_strided_slice %87 {offsets = [0, 0], sizes = [1, 128], strides = [1, 1]} : vector<5x128xf32> to vector<1x128xf32>
    %c0_57 = arith.constant 0 : index
    %c0_58 = arith.constant 0 : index
    %89 = vector.load %arg15[%c0_57, %c0_58] : memref<5x128xf32, #tpu.memory_space<vmem>>, vector<1x128xf32>
    tpu.vector_store %arg15[%c0_57, %c0_58], %88 {strides = array<i32>} : memref<5x128xf32, #tpu.memory_space<vmem>>, vector<1x128xf32>,
    %90 = vector.extract_strided_slice %87 {offsets = [1, 0], sizes = [1, 128], strides = [1, 1]} : vector<5x128xf32> to vector<1x128xf32>
    %c1_59 = arith.constant 1 : index
    %c0_60 = arith.constant 0 : index
    %91 = vector.load %arg15[%c1_59, %c0_60] : memref<5x128xf32, #tpu.memory_space<vmem>>, vector<1x128xf32>
    tpu.vector_store %arg15[%c1_59, %c0_60], %90 {strides = array<i32>} : memref<5x128xf32, #tpu.memory_space<vmem>>, vector<1x128xf32>,
    %92 = vector.extract_strided_slice %87 {offsets = [2, 0], sizes = [1, 128], strides = [1, 1]} : vector<5x128xf32> to vector<1x128xf32>
    %c2_61 = arith.constant 2 : index
    %c0_62 = arith.constant 0 : index
    %93 = vector.load %arg15[%c2_61, %c0_62] : memref<5x128xf32, #tpu.memory_space<vmem>>, vector<1x128xf32>
    tpu.vector_store %arg15[%c2_61, %c0_62], %92 {strides = array<i32>} : memref<5x128xf32, #tpu.memory_space<vmem>>, vector<1x128xf32>,
    %94 = vector.extract_strided_slice %87 {offsets = [3, 0], sizes = [1, 128], strides = [1, 1]} : vector<5x128xf32> to vector<1x128xf32>
    %c3_63 = arith.constant 3 : index
    %c0_64 = arith.constant 0 : index
    %95 = vector.load %arg15[%c3_63, %c0_64] : memref<5x128xf32, #tpu.memory_space<vmem>>, vector<1x128xf32>
    tpu.vector_store %arg15[%c3_63, %c0_64], %94 {strides = array<i32>} : memref<5x128xf32, #tpu.memory_space<vmem>>, vector<1x128xf32>,
    %96 = vector.extract_strided_slice %87 {offsets = [4, 0], sizes = [1, 128], strides = [1, 1]} : vector<5x128xf32> to vector<1x128xf32>
    %c4_65 = arith.constant 4 : index
    %c0_66 = arith.constant 0 : index
    %97 = vector.load %arg15[%c4_65, %c0_66] : memref<5x128xf32, #tpu.memory_space<vmem>>, vector<1x128xf32>
    tpu.vector_store %arg15[%c4_65, %c0_66], %96 {strides = array<i32>} : memref<5x128xf32, #tpu.memory_space<vmem>>, vector<1x128xf32>,
    %cst_67 = arith.constant 0.000000e+00 : f32
    %98 = vector.broadcast %cst_67 : f32 to vector<1x128xf32>
    %c0_68 = arith.constant 0 : index
    %c0_69 = arith.constant 0 : index
    %99 = vector.load %arg15[%c0_68, %c0_69] : memref<5x128xf32, #tpu.memory_space<vmem>>, vector<1x128xf32>
    %100 = arith.truncf %99 : vector<1x128xf32> to vector<1x128xbf16>
    %c0_70 = arith.constant 0 : index
    %c0_71 = arith.constant 0 : index
    %c0_72 = arith.constant 0 : index
    %101 = vector.load %arg6[%c0_70, %c0_71, %c0_72] : memref<5x128x128xbf16, #tpu.memory_space<vmem>>, vector<1x128x128xbf16>
    %102 = vector.shape_cast %101 : vector<1x128x128xbf16> to vector<128x128xbf16>
    %cst_73 = arith.constant dense<0.000000e+00> : vector<1x128xf32>
    %103 = tpu.matmul %100, %102, %cst_73 {dimension_numbers = #tpu.dot_dimension_numbers<[1], [0], [0], [1], [0, 0, 1, 1], [], []>} : vector<1x128xbf16>, vector<128x128xbf16>, vector<1x128xf32> -> vector<1x128xf32>
    %104 = arith.addf %98, %103 : vector<1x128xf32>
    %c1_74 = arith.constant 1 : index
    %c0_75 = arith.constant 0 : index
    %105 = vector.load %arg15[%c1_74, %c0_75] : memref<5x128xf32, #tpu.memory_space<vmem>>, vector<1x128xf32>
    %106 = arith.truncf %105 : vector<1x128xf32> to vector<1x128xbf16>
    %c1_76 = arith.constant 1 : index
    %c0_77 = arith.constant 0 : index
    %c0_78 = arith.constant 0 : index
    %107 = vector.load %arg6[%c1_76, %c0_77, %c0_78] : memref<5x128x128xbf16, #tpu.memory_space<vmem>>, vector<1x128x128xbf16>
    %108 = vector.shape_cast %107 : vector<1x128x128xbf16> to vector<128x128xbf16>
    %cst_79 = arith.constant dense<0.000000e+00> : vector<1x128xf32>
    %109 = tpu.matmul %106, %108, %cst_79 {dimension_numbers = #tpu.dot_dimension_numbers<[1], [0], [0], [1], [0, 0, 1, 1], [], []>} : vector<1x128xbf16>, vector<128x128xbf16>, vector<1x128xf32> -> vector<1x128xf32>
    %110 = arith.addf %104, %109 : vector<1x128xf32>
    %c2_80 = arith.constant 2 : index
    %c0_81 = arith.constant 0 : index
    %111 = vector.load %arg15[%c2_80, %c0_81] : memref<5x128xf32, #tpu.memory_space<vmem>>, vector<1x128xf32>
    %112 = arith.truncf %111 : vector<1x128xf32> to vector<1x128xbf16>
    %c2_82 = arith.constant 2 : index
    %c0_83 = arith.constant 0 : index
    %c0_84 = arith.constant 0 : index
    %113 = vector.load %arg6[%c2_82, %c0_83, %c0_84] : memref<5x128x128xbf16, #tpu.memory_space<vmem>>, vector<1x128x128xbf16>
    %114 = vector.shape_cast %113 : vector<1x128x128xbf16> to vector<128x128xbf16>
    %cst_85 = arith.constant dense<0.000000e+00> : vector<1x128xf32>
    %115 = tpu.matmul %112, %114, %cst_85 {dimension_numbers = #tpu.dot_dimension_numbers<[1], [0], [0], [1], [0, 0, 1, 1], [], []>} : vector<1x128xbf16>, vector<128x128xbf16>, vector<1x128xf32> -> vector<1x128xf32>
    %116 = arith.addf %110, %115 : vector<1x128xf32>
    %c3_86 = arith.constant 3 : index
    %c0_87 = arith.constant 0 : index
    %117 = vector.load %arg15[%c3_86, %c0_87] : memref<5x128xf32, #tpu.memory_space<vmem>>, vector<1x128xf32>
    %118 = arith.truncf %117 : vector<1x128xf32> to vector<1x128xbf16>
    %c3_88 = arith.constant 3 : index
    %c0_89 = arith.constant 0 : index
    %c0_90 = arith.constant 0 : index
    %119 = vector.load %arg6[%c3_88, %c0_89, %c0_90] : memref<5x128x128xbf16, #tpu.memory_space<vmem>>, vector<1x128x128xbf16>
    %120 = vector.shape_cast %119 : vector<1x128x128xbf16> to vector<128x128xbf16>
    %cst_91 = arith.constant dense<0.000000e+00> : vector<1x128xf32>
    %121 = tpu.matmul %118, %120, %cst_91 {dimension_numbers = #tpu.dot_dimension_numbers<[1], [0], [0], [1], [0, 0, 1, 1], [], []>} : vector<1x128xbf16>, vector<128x128xbf16>, vector<1x128xf32> -> vector<1x128xf32>
    %122 = arith.addf %116, %121 : vector<1x128xf32>
    %c4_92 = arith.constant 4 : index
    %c0_93 = arith.constant 0 : index
    %123 = vector.load %arg15[%c4_92, %c0_93] : memref<5x128xf32, #tpu.memory_space<vmem>>, vector<1x128xf32>
    %124 = arith.truncf %123 : vector<1x128xf32> to vector<1x128xbf16>
    %c4_94 = arith.constant 4 : index
    %c0_95 = arith.constant 0 : index
    %c0_96 = arith.constant 0 : index
    %125 = vector.load %arg6[%c4_94, %c0_95, %c0_96] : memref<5x128x128xbf16, #tpu.memory_space<vmem>>, vector<1x128x128xbf16>
    %126 = vector.shape_cast %125 : vector<1x128x128xbf16> to vector<128x128xbf16>
    %cst_97 = arith.constant dense<0.000000e+00> : vector<1x128xf32>
    %127 = tpu.matmul %124, %126, %cst_97 {dimension_numbers = #tpu.dot_dimension_numbers<[1], [0], [0], [1], [0, 0, 1, 1], [], []>} : vector<1x128xbf16>, vector<128x128xbf16>, vector<1x128xf32> -> vector<1x128xf32>
    %128 = arith.addf %122, %127 : vector<1x128xf32>
    %c0_98 = arith.constant 0 : index
    %c0_99 = arith.constant 0 : index
    %129 = vector.load %arg7[%c0_98, %c0_99] : memref<1x128xf32, #tpu.memory_space<vmem>>, vector<1x128xf32>
    %130 = arith.addf %128, %129 : vector<1x128xf32>
    %cst_100 = arith.constant 0.000000e+00 : f32
    %131 = vector.broadcast %cst_100 : f32 to vector<1x128xf32>
    %132 = arith.maximumf %130, %131 : vector<1x128xf32>
    %133 = arith.truncf %132 : vector<1x128xf32> to vector<1x128xbf16>
    %c0_101 = arith.constant 0 : index
    %c0_102 = arith.constant 0 : index
    %134 = vector.load %arg8[%c0_101, %c0_102] : memref<128x128xbf16, #tpu.memory_space<vmem>>, vector<128x128xbf16>
    %cst_103 = arith.constant dense<0.000000e+00> : vector<1x128xf32>
    %135 = tpu.matmul %133, %134, %cst_103 {dimension_numbers = #tpu.dot_dimension_numbers<[1], [0], [0], [1], [0, 0, 1, 1], [], []>} : vector<1x128xbf16>, vector<128x128xbf16>, vector<1x128xf32> -> vector<1x128xf32>
    %c0_104 = arith.constant 0 : index
    %c0_105 = arith.constant 0 : index
    %136 = vector.load %arg9[%c0_104, %c0_105] : memref<1x128xf32, #tpu.memory_space<vmem>>, vector<1x128xf32>
    %137 = arith.addf %135, %136 : vector<1x128xf32>
    %cst_106 = arith.constant 0.000000e+00 : f32
    %138 = vector.broadcast %cst_106 : f32 to vector<1x128xf32>
    %139 = arith.maximumf %137, %138 : vector<1x128xf32>
    %140 = arith.truncf %139 : vector<1x128xf32> to vector<1x128xbf16>
    %c0_107 = arith.constant 0 : index
    %c0_108 = arith.constant 0 : index
    %141 = vector.load %arg10[%c0_107, %c0_108] : memref<128x128xbf16, #tpu.memory_space<vmem>>, vector<128x128xbf16>
    %cst_109 = arith.constant dense<0.000000e+00> : vector<1x128xf32>
    %142 = tpu.matmul %140, %141, %cst_109 {dimension_numbers = #tpu.dot_dimension_numbers<[1], [0], [0], [1], [0, 0, 1, 1], [], []>} : vector<1x128xbf16>, vector<128x128xbf16>, vector<1x128xf32> -> vector<1x128xf32>
    %c0_110 = arith.constant 0 : index
    %c0_111 = arith.constant 0 : index
    %143 = vector.load %arg11[%c0_110, %c0_111] : memref<1x128xf32, #tpu.memory_space<vmem>>, vector<1x128xf32>
    %144 = arith.addf %142, %143 : vector<1x128xf32>
    %c0_112 = arith.constant 0 : index
    %c0_113 = arith.constant 0 : index
    %c0_114 = arith.constant 0 : index
    %145 = vector.load %arg12[%c0_112, %c0_113, %c0_114] : memref<1x1x128xf32, #tpu.memory_space<vmem>>, vector<1x1x128xf32>
    %146 = vector.shape_cast %145 : vector<1x1x128xf32> to vector<1x128xf32>
    %147 = vector.shape_cast %144 : vector<1x128xf32> to vector<1x1x128xf32>
    tpu.vector_store %arg12[%c0_112, %c0_113, %c0_114], %147 {strides = array<i32>} : memref<1x1x128xf32, #tpu.memory_space<vmem>>, vector<1x1x128xf32>,
    return
  }
  func.func @transform_0(%arg0: i32) -> (i32, i32, i32) {
    %c0_i32 = arith.constant 0 : i32
    %c0_i32_0 = arith.constant 0 : i32
    %c0_i32_1 = arith.constant 0 : i32
    return %arg0, %c0_i32, %c0_i32_0 : i32, i32, i32
  }
  func.func @transform_1(%arg0: i32) -> (i32, i32, i32) {
    %c0_i32 = arith.constant 0 : i32
    %c0_i32_0 = arith.constant 0 : i32
    %c0_i32_1 = arith.constant 0 : i32
    %c0_i32_2 = arith.constant 0 : i32
    return %c0_i32, %c0_i32_0, %c0_i32_1 : i32, i32, i32
  }
  func.func @transform_2(%arg0: i32) -> (i32, i32) {
    %c0_i32 = arith.constant 0 : i32
    %c0_i32_0 = arith.constant 0 : i32
    %c0_i32_1 = arith.constant 0 : i32
    return %c0_i32, %c0_i32_0 : i32, i32
  }
  func.func @transform_3(%arg0: i32) -> (i32, i32, i32) {
    %c0_i32 = arith.constant 0 : i32
    %c0_i32_0 = arith.constant 0 : i32
    %c0_i32_1 = arith.constant 0 : i32
    %c0_i32_2 = arith.constant 0 : i32
    return %c0_i32, %c0_i32_0, %c0_i32_1 : i32, i32, i32
  }
  func.func @transform_4(%arg0: i32) -> (i32, i32) {
    %c0_i32 = arith.constant 0 : i32
    %c0_i32_0 = arith.constant 0 : i32
    %c0_i32_1 = arith.constant 0 : i32
    return %c0_i32, %c0_i32_0 : i32, i32
  }
  func.func @transform_5(%arg0: i32) -> (i32, i32, i32) {
    %c0_i32 = arith.constant 0 : i32
    %c0_i32_0 = arith.constant 0 : i32
    %c0_i32_1 = arith.constant 0 : i32
    %c0_i32_2 = arith.constant 0 : i32
    return %c0_i32, %c0_i32_0, %c0_i32_1 : i32, i32, i32
  }
  func.func @transform_6(%arg0: i32) -> (i32, i32) {
    %c0_i32 = arith.constant 0 : i32
    %c0_i32_0 = arith.constant 0 : i32
    %c0_i32_1 = arith.constant 0 : i32
    return %c0_i32, %c0_i32_0 : i32, i32
  }
  func.func @transform_7(%arg0: i32) -> (i32, i32) {
    %c0_i32 = arith.constant 0 : i32
    %c0_i32_0 = arith.constant 0 : i32
    %c0_i32_1 = arith.constant 0 : i32
    return %c0_i32, %c0_i32_0 : i32, i32
  }
  func.func @transform_8(%arg0: i32) -> (i32, i32) {
    %c0_i32 = arith.constant 0 : i32
    %c0_i32_0 = arith.constant 0 : i32
    %c0_i32_1 = arith.constant 0 : i32
    return %c0_i32, %c0_i32_0 : i32, i32
  }
  func.func @transform_9(%arg0: i32) -> (i32, i32) {
    %c0_i32 = arith.constant 0 : i32
    %c0_i32_0 = arith.constant 0 : i32
    %c0_i32_1 = arith.constant 0 : i32
    return %c0_i32, %c0_i32_0 : i32, i32
  }
  func.func @transform_10(%arg0: i32) -> (i32, i32) {
    %c0_i32 = arith.constant 0 : i32
    %c0_i32_0 = arith.constant 0 : i32
    %c0_i32_1 = arith.constant 0 : i32
    return %c0_i32, %c0_i32_0 : i32, i32
  }
  func.func @transform_11(%arg0: i32) -> (i32, i32, i32) {
    %c0_i32 = arith.constant 0 : i32
    %c0_i32_0 = arith.constant 0 : i32
    %c0_i32_1 = arith.constant 0 : i32
    return %arg0, %c0_i32, %c0_i32_0 : i32, i32, i32
  }
}

</mosaic_0001>

<llo_original>
// kernel: lenet_forward.1
$region0: #{lenet_forward.1}
  #allocation0 [shape = 'u32[]', space=smem, size = 0x4, offset = 0x4, fixed_abs, tag = 'smem constant byte address 0x4 - core index']
  #allocation1 [shape = 'u32[144,128]{1,0:T(1,128)}', space=vmem, size = 0x12000, scoped, tag = 'internal scratch']
  #allocation2 [shape = 'f32[28,128]{1,0:T(8,128)}', space=vmem, size = 0x4000, scoped, tag = 'scratch operand']
  #allocation3 [shape = 'f32[10,128]{1,0:T(8,128)}', space=vmem, size = 0x2000, scoped, tag = 'scratch operand']
  #allocation4 [shape = 'f32[5,128]{1,0:T(8,128)}', space=vmem, size = 0x1000, scoped, tag = 'scratch operand']
  %s0 = inlined_call_operand.vmem [shape: f32[2,32,32], index: 0, kind: input, shape index: {}]
  %s1 = inlined_call_operand.vmem [shape: bf16[5,32,256], index: 1, kind: input, shape index: {}]
  %s2 = inlined_call_operand.vmem [shape: f32[1,128], index: 2, kind: input, shape index: {}]
  %s3 = inlined_call_operand.hbm [shape: bf16[5,128,256], index: 3, kind: input, shape index: {}]
  %s4 = inlined_call_operand.vmem [shape: f32[1,128], index: 4, kind: input, shape index: {}]
  %s5 = inlined_call_operand.hbm [shape: bf16[5,128,128], index: 5, kind: input, shape index: {}]
  %s6 = inlined_call_operand.vmem [shape: f32[1,128], index: 6, kind: input, shape index: {}]
  %s7 = inlined_call_operand.vmem [shape: bf16[128,128], index: 7, kind: input, shape index: {}]
  %s8 = inlined_call_operand.vmem [shape: f32[1,128], index: 8, kind: input, shape index: {}]
  %s9 = inlined_call_operand.hbm [shape: bf16[128,128], index: 9, kind: input, shape index: {}]
  %s10 = inlined_call_operand.vmem [shape: f32[1,128], index: 10, kind: input, shape index: {}]
  %s11 = inlined_call_operand.hbm [shape: f32[2,1,128], index: 11, kind: output, shape index: {}]
  %s12 = sld [smem:[#allocation0]]
  $region89: #{lenet_forward.1} parent=0
    _
  %s14 = ssub.s32 1, %s12
  %s15 = scalar_select 0, %s14, %s12
  $region1: #{lenet_forward.1} parent=0
    #allocation5 [shape = 'u8[327680]{0}', space=vmem, size = 0x50000, scoped, tag = 'input window, operand 3, single buffered']
    #allocation6 [shape = 's32[2]{0}', space=sflag, size = 0x8, scoped, tag = 'scoped memory for lenet_forward.1']
    #allocation7 [shape = 's32[2]{0}', space=sflag, size = 0x8, scoped, tag = 'scoped memory for lenet_forward.1']
    #allocation8 [shape = 'u8[163840]{0}', space=vmem, size = 0x28000, scoped, tag = 'input window, operand 5, single buffered']
    #allocation9 [shape = 's32[1]{0}', space=sflag, size = 0x4, scoped, tag = 'scoped memory for lenet_forward.1']
    #allocation10 [shape = 'u8[32768]{0}', space=vmem, size = 0x8000, scoped, tag = 'input window, operand 9, single buffered']
    #allocation11 [shape = 'u8[1024]{0}', space=vmem, size = 0x400, scoped, tag = 'output window, operand 0']
    %16 = vsyncpa [#allocation6], 0
    %17 = vsyncpa [#allocation9], 0
    %18 = vsyncpa [#allocation7], 0
    %s19 = scalar_lea.sflag [#allocation7], 1
    %20 = vsyncpa %s19, 0
    loop: start=0, step=1, limit=4
    $region2: #{lenet_forward.1} parent=1 // loop_pre_header
      _
    $region3: #{lenet_forward.1} parent=1 // loop_header
      %s22 = sphi 0, %s26
      %p23 = scmp.ge.s32.totalorder %s22, 4
      %s32 = sphi 0, %s34
      %s35 = sphi 0, %s32
      %s36 = sphi 0, %s35
      %s52 = sphi 0, %s36
      %s56 = sphi 0, %s56
      %s58 = sphi 0, %s56
      %s59 = sphi 0, %s58
      %s73 = sphi 0, %s59
      %s77 = sphi 0, %s77
      %s79 = sphi 0, %s77
      %s80 = sphi 0, %s79
      %s94 = sphi 0, %s80
      %s98 = sphi 0, %s98
      %s100 = sphi 0, %s98
      %s101 = sphi 0, %s100
      %s115 = sphi 0, %s101
      %s119 = sphi 0, %s119
      %s121 = sphi 0, %s119
      %s122 = sphi 0, %s121
      %s136 = sphi 0, %s122
      %s140 = sphi 0, %s140
      %s142 = sphi 0, %s140
      %s143 = sphi 0, %s142
      %s157 = sphi 0, %s143
      %s161 = sphi 0, %s161
      %s163 = sphi 0, %s161
      %s164 = sphi 0, %s163
      %s178 = sphi 0, %s164
      %s182 = sphi 0, %s182
      %s184 = sphi 0, %s182
      %s185 = sphi 0, %s184
      %s199 = sphi 0, %s185
      %s203 = sphi 0, %s203
      %s205 = sphi 0, %s203
      %s206 = sphi 0, %s205
      %s220 = sphi 0, %s206
      %s224 = sphi 0, %s224
      %s226 = sphi 0, %s224
      %s227 = sphi 0, %s226
      %s241 = sphi 0, %s227
      %s245 = sphi 0, %s245
      %s247 = sphi 0, %s245
      %s248 = sphi 0, %s247
      %s262 = sphi 0, %s248
      %s268 = sphi 0, %s270
      %s271 = sphi 0, %s268
      %s272 = sphi 0, %s271
      %s288 = sphi 0, %s272
    $region4: #{lenet_forward.1} parent=1 // loop_header_branch
      %25 = sbr.rel (%p23) target = $region8
    $region5: #{lenet_forward.1} parent=1 // loop_body
      %s27 = ssub.s32 %s22, 1
      %s28 = ssub.s32 %s22, 2
      %s29 = sadd.s32 %s22, 1
      %s30 = ssub.s32 %s22, %s29
      %p31 = scmp.eq.s32.totalorder %s30, 0
      %s33 = sadd.s32 %s32, 1
      %s34 = scalar_select %p31, %s32, %s33
      %p37 = pneg %p31
      %p38 = scmp.eq.s32.totalorder %s22, 1
      %p39 = por %p37, %p38
      %p40 = scmp.ne.s32.totalorder %s32, %s35
      %p41 = scmp.eq.s32.totalorder %s22, 0
      %p42 = por %p40, %p41
      %p43 = scmp.ne.s32.totalorder %s32, %s35
      %p44 = scmp.eq.s32.totalorder %s27, 1
      %p45 = por %p43, %p44
      %p46 = scmp.ne.s32.totalorder %s35, %s36
      %p47 = scmp.eq.s32.totalorder %s27, 0
      %p48 = por %p46, %p47
      %p49 = scmp.ne.s32.totalorder %s35, %s36
      %p50 = scmp.eq.s32.totalorder %s28, 1
      %p51 = por %p49, %p50
      %p53 = scmp.ne.s32.totalorder %s36, %s52
      %p54 = scmp.eq.s32.totalorder %s28, 0
      %p55 = por %p53, %p54
      %s57 = sadd.s32 %s56, 1
      %p60 = scmp.eq.s32.totalorder %s22, 1
      %p61 = scmp.ne.s32.totalorder %s56, %s58
      %p62 = scmp.eq.s32.totalorder %s22, 0
      %p63 = por %p61, %p62
      %p64 = scmp.ne.s32.totalorder %s56, %s58
      %p65 = scmp.eq.s32.totalorder %s27, 1
      %p66 = por %p64, %p65
      %p67 = scmp.ne.s32.totalorder %s58, %s59
      %p68 = scmp.eq.s32.totalorder %s27, 0
      %p69 = por %p67, %p68
      %p70 = scmp.ne.s32.totalorder %s58, %s59
      %p71 = scmp.eq.s32.totalorder %s28, 1
      %p72 = por %p70, %p71
      %p74 = scmp.ne.s32.totalorder %s59, %s73
      %p75 = scmp.eq.s32.totalorder %s28, 0
      %p76 = por %p74, %p75
      %s78 = sadd.s32 %s77, 1
      %p81 = scmp.eq.s32.totalorder %s22, 1
      %p82 = scmp.ne.s32.totalorder %s77, %s79
      %p83 = scmp.eq.s32.totalorder %s22, 0
      %p84 = por %p82, %p83
      %p85 = scmp.ne.s32.totalorder %s77, %s79
      %p86 = scmp.eq.s32.totalorder %s27, 1
      %p87 = por %p85, %p86
      %p88 = scmp.ne.s32.totalorder %s79, %s80
      %p89 = scmp.eq.s32.totalorder %s27, 0
      %p90 = por %p88, %p89
      %p91 = scmp.ne.s32.totalorder %s79, %s80
      %p92 = scmp.eq.s32.totalorder %s28, 1
      %p93 = por %p91, %p92
      %p95 = scmp.ne.s32.totalorder %s80, %s94
      %p96 = scmp.eq.s32.totalorder %s28, 0
      %p97 = por %p95, %p96
      %s99 = sadd.s32 %s98, 1
      %p102 = scmp.eq.s32.totalorder %s22, 1
      %p103 = scmp.ne.s32.totalorder %s98, %s100
      %p104 = scmp.eq.s32.totalorder %s22, 0
      %p105 = por %p103, %p104
      %p106 = scmp.ne.s32.totalorder %s98, %s100
      %p107 = scmp.eq.s32.totalorder %s27, 1
      %p108 = por %p106, %p107
      %p109 = scmp.ne.s32.totalorder %s100, %s101
      %p110 = scmp.eq.s32.totalorder %s27, 0
      %p111 = por %p109, %p110
      %p112 = scmp.ne.s32.totalorder %s100, %s101
      %p113 = scmp.eq.s32.totalorder %s28, 1
      %p114 = por %p112, %p113
      %p116 = scmp.ne.s32.totalorder %s101, %s115
      %p117 = scmp.eq.s32.totalorder %s28, 0
      %p118 = por %p116, %p117
      %s120 = sadd.s32 %s119, 1
      %p123 = scmp.eq.s32.totalorder %s22, 1
      %p124 = scmp.ne.s32.totalorder %s119, %s121
      %p125 = scmp.eq.s32.totalorder %s22, 0
      %p126 = por %p124, %p125
      %p127 = scmp.ne.s32.totalorder %s119, %s121
      %p128 = scmp.eq.s32.totalorder %s27, 1
      %p129 = por %p127, %p128
      %p130 = scmp.ne.s32.totalorder %s121, %s122
      %p131 = scmp.eq.s32.totalorder %s27, 0
      %p132 = por %p130, %p131
      %p133 = scmp.ne.s32.totalorder %s121, %s122
      %p134 = scmp.eq.s32.totalorder %s28, 1
      %p135 = por %p133, %p134
      %p137 = scmp.ne.s32.totalorder %s122, %s136
      %p138 = scmp.eq.s32.totalorder %s28, 0
      %p139 = por %p137, %p138
      %s141 = sadd.s32 %s140, 1
      %p144 = scmp.eq.s32.totalorder %s22, 1
      %p145 = scmp.ne.s32.totalorder %s140, %s142
      %p146 = scmp.eq.s32.totalorder %s22, 0
      %p147 = por %p145, %p146
      %p148 = scmp.ne.s32.totalorder %s140, %s142
      %p149 = scmp.eq.s32.totalorder %s27, 1
      %p150 = por %p148, %p149
      %p151 = scmp.ne.s32.totalorder %s142, %s143
      %p152 = scmp.eq.s32.totalorder %s27, 0
      %p153 = por %p151, %p152
      %p154 = scmp.ne.s32.totalorder %s142, %s143
      %p155 = scmp.eq.s32.totalorder %s28, 1
      %p156 = por %p154, %p155
      %p158 = scmp.ne.s32.totalorder %s143, %s157
      %p159 = scmp.eq.s32.totalorder %s28, 0
      %p160 = por %p158, %p159
      %s162 = sadd.s32 %s161, 1
      %p165 = scmp.eq.s32.totalorder %s22, 1
      %p166 = scmp.ne.s32.totalorder %s161, %s163
      %p167 = scmp.eq.s32.totalorder %s22, 0
      %p168 = por %p166, %p167
      %p169 = scmp.ne.s32.totalorder %s161, %s163
      %p170 = scmp.eq.s32.totalorder %s27, 1
      %p171 = por %p169, %p170
      %p172 = scmp.ne.s32.totalorder %s163, %s164
      %p173 = scmp.eq.s32.totalorder %s27, 0
      %p174 = por %p172, %p173
      %p175 = scmp.ne.s32.totalorder %s163, %s164
      %p176 = scmp.eq.s32.totalorder %s28, 1
      %p177 = por %p175, %p176
      %p179 = scmp.ne.s32.totalorder %s164, %s178
      %p180 = scmp.eq.s32.totalorder %s28, 0
      %p181 = por %p179, %p180
      %s183 = sadd.s32 %s182, 1
      %p186 = scmp.eq.s32.totalorder %s22, 1
      %p187 = scmp.ne.s32.totalorder %s182, %s184
      %p188 = scmp.eq.s32.totalorder %s22, 0
      %p189 = por %p187, %p188
      %p190 = scmp.ne.s32.totalorder %s182, %s184
      %p191 = scmp.eq.s32.totalorder %s27, 1
      %p192 = por %p190, %p191
      %p193 = scmp.ne.s32.totalorder %s184, %s185
      %p194 = scmp.eq.s32.totalorder %s27, 0
      %p195 = por %p193, %p194
      %p196 = scmp.ne.s32.totalorder %s184, %s185
      %p197 = scmp.eq.s32.totalorder %s28, 1
      %p198 = por %p196, %p197
      %p200 = scmp.ne.s32.totalorder %s185, %s199
      %p201 = scmp.eq.s32.totalorder %s28, 0
      %p202 = por %p200, %p201
      %s204 = sadd.s32 %s203, 1
      %p207 = scmp.eq.s32.totalorder %s22, 1
      %p208 = scmp.ne.s32.totalorder %s203, %s205
      %p209 = scmp.eq.s32.totalorder %s22, 0
      %p210 = por %p208, %p209
      %p211 = scmp.ne.s32.totalorder %s203, %s205
      %p212 = scmp.eq.s32.totalorder %s27, 1
      %p213 = por %p211, %p212
      %p214 = scmp.ne.s32.totalorder %s205, %s206
      %p215 = scmp.eq.s32.totalorder %s27, 0
      %p216 = por %p214, %p215
      %p217 = scmp.ne.s32.totalorder %s205, %s206
      %p218 = scmp.eq.s32.totalorder %s28, 1
      %p219 = por %p217, %p218
      %p221 = scmp.ne.s32.totalorder %s206, %s220
      %p222 = scmp.eq.s32.totalorder %s28, 0
      %p223 = por %p221, %p222
      %s225 = sadd.s32 %s224, 1
      %p228 = scmp.eq.s32.totalorder %s22, 1
      %p229 = scmp.ne.s32.totalorder %s224, %s226
      %p230 = scmp.eq.s32.totalorder %s22, 0
      %p231 = por %p229, %p230
      %p232 = scmp.ne.s32.totalorder %s224, %s226
      %p233 = scmp.eq.s32.totalorder %s27, 1
      %p234 = por %p232, %p233
      %p235 = scmp.ne.s32.totalorder %s226, %s227
      %p236 = scmp.eq.s32.totalorder %s27, 0
      %p237 = por %p235, %p236
      %p238 = scmp.ne.s32.totalorder %s226, %s227
      %p239 = scmp.eq.s32.totalorder %s28, 1
      %p240 = por %p238, %p239
      %p242 = scmp.ne.s32.totalorder %s227, %s241
      %p243 = scmp.eq.s32.totalorder %s28, 0
      %p244 = por %p242, %p243
      %s246 = sadd.s32 %s245, 1
      %p249 = scmp.eq.s32.totalorder %s22, 1
      %p250 = scmp.ne.s32.totalorder %s245, %s247
      %p251 = scmp.eq.s32.totalorder %s22, 0
      %p252 = por %p250, %p251
      %p253 = scmp.ne.s32.totalorder %s245, %s247
      %p254 = scmp.eq.s32.totalorder %s27, 1
      %p255 = por %p253, %p254
      %p256 = scmp.ne.s32.totalorder %s247, %s248
      %p257 = scmp.eq.s32.totalorder %s27, 0
      %p258 = por %p256, %p257
      %p259 = scmp.ne.s32.totalorder %s247, %s248
      %p260 = scmp.eq.s32.totalorder %s28, 1
      %p261 = por %p259, %p260
      %p263 = scmp.ne.s32.totalorder %s248, %s262
      %p264 = scmp.eq.s32.totalorder %s28, 0
      %p265 = por %p263, %p264
      %s266 = ssub.s32 %s22, %s29
      %p267 = scmp.eq.s32.totalorder %s266, 0
      %s269 = sadd.s32 %s268, 1
      %s270 = scalar_select %p267, %s268, %s269
      %p273 = pneg %p267
      %p274 = scmp.eq.s32.totalorder %s22, 1
      %p275 = por %p273, %p274
      %p276 = scmp.ne.s32.totalorder %s268, %s271
      %p277 = scmp.eq.s32.totalorder %s22, 0
      %p278 = por %p276, %p277
      %p279 = scmp.ne.s32.totalorder %s268, %s271
      %p280 = scmp.eq.s32.totalorder %s27, 1
      %p281 = por %p279, %p280
      %p282 = scmp.ne.s32.totalorder %s271, %s272
      %p283 = scmp.eq.s32.totalorder %s27, 0
      %p284 = por %p282, %p283
      %p285 = scmp.ne.s32.totalorder %s271, %s272
      %p286 = scmp.eq.s32.totalorder %s28, 1
      %p287 = por %p285, %p286
      %p289 = scmp.ne.s32.totalorder %s272, %s288
      %p290 = scmp.eq.s32.totalorder %s28, 0
      %p291 = por %p289, %p290
      %p292 = scmp.le.s32.totalorder 1, %s22
      %p293 = scmp.lt.s32.totalorder %s22, 3
      %p294 = pnand %p292, %p293
      %p295 = pneg %p294
      // Predicated region
      $region9: #{lenet_forward.1} parent=5 // pred_check
        _
      $region10: #{lenet_forward.1} parent=5 // pred_check_branch
        %297 = sbr.rel (%p294) target = $region12
      $region11: #{lenet_forward.1} parent=5 // pred_region
        %s298 = ssub.s32 %s22, 1
        // Predicated region
        $region13: #{lenet_forward.1} parent=11 // pred_check
          %p299 = pneg %p69
        $region14: #{lenet_forward.1} parent=11 // pred_check_branch
          %301 = sbr.rel (%p299) target = $region16
        $region15: #{lenet_forward.1} parent=11 // pred_region
          _
        $region16: #{lenet_forward.1} parent=11 // pred_fallthru
          _
        // Predicated region
        $region17: #{lenet_forward.1} parent=11 // pred_check
          %p302 = pneg %p90
        $region18: #{lenet_forward.1} parent=11 // pred_check_branch
          %304 = sbr.rel (%p302) target = $region20
        $region19: #{lenet_forward.1} parent=11 // pred_region
          _
        $region20: #{lenet_forward.1} parent=11 // pred_fallthru
          _
        // Predicated region
        $region21: #{lenet_forward.1} parent=11 // pred_check
          %p305 = pneg %p111
        $region22: #{lenet_forward.1} parent=11 // pred_check_branch
          %307 = sbr.rel (%p305) target = $region24
        $region23: #{lenet_forward.1} parent=11 // pred_region
          %s309 = ssub.s32 10240, 10240
          %310 = vsyncadd [#allocation6], %s309
          %s311 = sshll.u32 [#allocation5], 4
          %s312 = int_to_ptr.vmem [resolvable:$true] %s311
          %317 = dma.hbm_to_vmem [thread:$0]  %s3, 10240, %s312, [#allocation6], 128, 128, 8
        $region24: #{lenet_forward.1} parent=11 // pred_fallthru
          _
        // Predicated region
        $region25: #{lenet_forward.1} parent=11 // pred_check
          %p318 = pneg %p132
        $region26: #{lenet_forward.1} parent=11 // pred_check_branch
          %320 = sbr.rel (%p318) target = $region28
        $region27: #{lenet_forward.1} parent=11 // pred_region
          _
        $region28: #{lenet_forward.1} parent=11 // pred_fallthru
          _
        // Predicated region
        $region29: #{lenet_forward.1} parent=11 // pred_check
          %p321 = pneg %p153
        $region30: #{lenet_forward.1} parent=11 // pred_check_branch
          %323 = sbr.rel (%p321) target = $region32
        $region31: #{lenet_forward.1} parent=11 // pred_region
          %s325 = ssub.s32 5120, 5120
          %326 = vsyncadd [#allocation9], %s325
          %s327 = sshll.u32 [#allocation8], 4
          %s328 = int_to_ptr.vmem [resolvable:$true] %s327
          %333 = dma.hbm_to_vmem [thread:$0]  %s5, 5120, %s328, [#allocation9], 64, 64, 4
        $region32: #{lenet_forward.1} parent=11 // pred_fallthru
          _
        // Predicated region
        $region33: #{lenet_forward.1} parent=11 // pred_check
          %p334 = pneg %p174
        $region34: #{lenet_forward.1} parent=11 // pred_check_branch
          %336 = sbr.rel (%p334) target = $region36
        $region35: #{lenet_forward.1} parent=11 // pred_region
          _
        $region36: #{lenet_forward.1} parent=11 // pred_fallthru
          _
        // Predicated region
        $region37: #{lenet_forward.1} parent=11 // pred_check
          %p337 = pneg %p195
        $region38: #{lenet_forward.1} parent=11 // pred_check_branch
          %339 = sbr.rel (%p337) target = $region40
        $region39: #{lenet_forward.1} parent=11 // pred_region
          _
        $region40: #{lenet_forward.1} parent=11 // pred_fallthru
          _
        // Predicated region
        $region41: #{lenet_forward.1} parent=11 // pred_check
          %p340 = pneg %p216
        $region42: #{lenet_forward.1} parent=11 // pred_check_branch
          %342 = sbr.rel (%p340) target = $region44
        $region43: #{lenet_forward.1} parent=11 // pred_region
          _
        $region44: #{lenet_forward.1} parent=11 // pred_fallthru
          _
        // Predicated region
        $region45: #{lenet_forward.1} parent=11 // pred_check
          %p343 = pneg %p237
        $region46: #{lenet_forward.1} parent=11 // pred_check_branch
          %345 = sbr.rel (%p343) target = $region48
        $region47: #{lenet_forward.1} parent=11 // pred_region
          %s347 = ssub.s32 1024, 1024
          %348 = vsyncadd [#allocation9], %s347
          %s349 = sshll.u32 [#allocation10], 4
          %s350 = int_to_ptr.vmem [resolvable:$true] %s349
          %355 = dma.hbm_to_vmem [thread:$0]  %s9, 1024, %s350, [#allocation9], 64, 64, 4
        $region48: #{lenet_forward.1} parent=11 // pred_fallthru
          _
        // Predicated region
        $region49: #{lenet_forward.1} parent=11 // pred_check
          %p356 = pneg %p258
        $region50: #{lenet_forward.1} parent=11 // pred_check_branch
          %358 = sbr.rel (%p356) target = $region52
        $region51: #{lenet_forward.1} parent=11 // pred_region
          _
        $region52: #{lenet_forward.1} parent=11 // pred_fallthru
          _
      $region12: #{lenet_forward.1} parent=5 // pred_fallthru
        _
      %p359 = scmp.lt.s32.totalorder %s22, 2
      // Predicated region
      $region53: #{lenet_forward.1} parent=5 // pred_check
        %p360 = pneg %p359
      $region54: #{lenet_forward.1} parent=5 // pred_check_branch
        %362 = sbr.rel (%p360) target = $region56
      $region55: #{lenet_forward.1} parent=5 // pred_region
        // Predicated region
        $region57: #{lenet_forward.1} parent=55 // pred_check
          %p363 = pneg %p42
        $region58: #{lenet_forward.1} parent=55 // pred_check_branch
          %365 = sbr.rel (%p363) target = $region60
        $region59: #{lenet_forward.1} parent=55 // pred_region
          %p366 = scmp.lt.s32.totalorder %s22, 1
          %s367 = scalar_select %p366, %s22, 1
          %s368 = smul.addr %s367, 4
          %s369 = smul.addr %s368, 8
          %s370 = scalar_lea.vmem %s0, %s369
        $region60: #{lenet_forward.1} parent=55 // pred_fallthru
          _
      $region56: #{lenet_forward.1} parent=5 // pred_fallthru
        _
      %p371 = scmp.le.s32.totalorder 1, %s22
      %p372 = scmp.lt.s32.totalorder %s22, 3
      %p373 = pnand %p371, %p372
      %p374 = pneg %p373
      // Predicated region
      $region61: #{lenet_forward.1} parent=5 // pred_check
        _
      $region62: #{lenet_forward.1} parent=5 // pred_check_branch
        %376 = sbr.rel (%p373) target = $region64
      $region63: #{lenet_forward.1} parent=5 // pred_region
        %s377 = ssub.s32 %s22, 1
        // Predicated region
        $region65: #{lenet_forward.1} parent=63 // pred_check
          %p378 = pneg %p111
        $region66: #{lenet_forward.1} parent=63 // pred_check_branch
          %380 = sbr.rel (%p378) target = $region68
        $region67: #{lenet_forward.1} parent=63 // pred_region
          %381 = dma.done [#allocation6], 10240
        $region68: #{lenet_forward.1} parent=63 // pred_fallthru
          _
        // Predicated region
        $region69: #{lenet_forward.1} parent=63 // pred_check
          %p382 = pneg %p153
        $region70: #{lenet_forward.1} parent=63 // pred_check_branch
          %384 = sbr.rel (%p382) target = $region72
        $region71: #{lenet_forward.1} parent=63 // pred_region
          %385 = dma.done [#allocation9], 5120
        $region72: #{lenet_forward.1} parent=63 // pred_fallthru
          _
        // Predicated region
        $region73: #{lenet_forward.1} parent=63 // pred_check
          %p386 = pneg %p237
        $region74: #{lenet_forward.1} parent=63 // pred_check_branch
          %388 = sbr.rel (%p386) target = $region76
        $region75: #{lenet_forward.1} parent=63 // pred_region
          %389 = dma.done [#allocation9], 1024
        $region76: #{lenet_forward.1} parent=63 // pred_fallthru
          _
        %p390 = scmp.lt.s32.totalorder %s27, 1
        %s391 = scalar_select %p390, %s27, 1
        %s392 = smul.addr %s391, 4
        %s393 = smul.addr %s392, 8
        %s394 = scalar_lea.vmem %s0, %s393
        %p395 = pneg %p48
        %p396 = pneg %p45
        %p397 = pneg %p69
        %p398 = pneg %p66
        %p399 = pneg %p90
        %p400 = pneg %p87
        %p401 = pneg %p111
        %p402 = pneg %p108
        %p403 = pneg %p132
        %p404 = pneg %p129
        %p405 = pneg %p153
        %p406 = pneg %p150
        %p407 = pneg %p174
        %p408 = pneg %p171
        %p409 = pneg %p195
        %p410 = pneg %p192
        %p411 = pneg %p216
        %p412 = pneg %p213
        %p413 = pneg %p237
        %p414 = pneg %p234
        %p415 = pneg %p258
        %p416 = pneg %p255
        %p417 = pneg %p284
        %p418 = pneg %p281
        %s419 = sand.u32 %s271, 1
        %s420 = scalar_lea.sflag [#allocation7], %s419
        %s421 = sand.u32 %s271, 1
        %s422 = scalar_lea.vmem [#allocation11], %s421
        %p423 = scmp.lt.s32.totalorder %s27, 1
        %s424 = scalar_select %p423, %s27, 1
        %s425 = smul.addr %s424, 4
        %s426 = smul.addr %s425, 8
        %s427 = scalar_lea.vmem %s0, %s426
        %v429 = vld [vmem:[%s2] sm:$0x1]
        %v430 = vld [vmem:[%s4] sm:$0x1]
        %v431 = vld [vmem:[%s427] sm:$0xff]
        %v432 = vld [vmem:[%s427 + $0x8] sm:$0xff]
        %v433 = vld [vmem:[%s427 + $0x10] sm:$0xff]
        %v434 = vld [vmem:[%s427 + $0x18] sm:$0xff]
        %v435 = vpack.c.bf16 %v432, %v431
        %v436 = vpack.c.bf16 %v434, %v433
        %v437 = vld [vmem:[%s1] sm:$0xff]
        %v438 = vld [vmem:[%s1 + $0x8] sm:$0xff]
        %v439 = vld [vmem:[%s1 + $0x10] sm:$0xff]
        %v440 = vld [vmem:[%s1 + $0x18] sm:$0xff]
        %s441 = scalar_lea.vmem %s1, 32
        %v442 = vld [vmem:[%s441] sm:$0xff]
        %v443 = vld [vmem:[%s441 + $0x8] sm:$0xff]
        %v444 = vld [vmem:[%s441 + $0x10] sm:$0xff]
        %v445 = vld [vmem:[%s441 + $0x18] sm:$0xff]
        %vm446 = vsmask.f32 7424
        %v448 = vshrl.u32 %v435, 16
        %v450 = vshll.u32 %v435, 16
        %v452 = vrot.slane %v450, 1
        %v453 = vor.u32 %v448, %v452
        %v455 = vshll.u32 %v436, 16
        %v457 = vrot.slane %v455, 1
        %v458 = vsel %vm446, %v453, %v457
        %v459 = vshrl.u32 %v436, 16
        %v461 = vor.u32 %v459, %v457
        %v466 = vunpack.c.l.b16 %v442
        %v467 = vunpack.c.h.b16 %v442
        %v468 = vunpack.c.l.b16 %v443
        %v469 = vunpack.c.h.b16 %v443
        %v470 = vunpack.c.l.b16 %v444
        %v471 = vunpack.c.h.b16 %v444
        %v472 = vunpack.c.l.b16 %v445
        %v473 = vunpack.c.h.b16 %v445
        %v474 = vpack.c.b16 %v468, %v466
        %v475 = vpack.c.b16 %v469, %v467
        %v476 = vpack.c.b16 %v472, %v470
        %v477 = vpack.c.b16 %v473, %v471
        %vm482 = vcmask 261120
        %v484 = vsel %vm482, %v458, 0
        %v487 = vsel %vm482, %v461, 0
        %489 = vmatprep.subr.bf16.mxu0 0
        %490 = vmatpush1.bf16.msra.mxu0 0
        %491 = vmatprep.subr.bf16.mxu0 0
        %492 = vmatpush1.bf16.msra.mxu0 0
        %493 = vmatprep.subr.bf16.mxu0 0
        %494 = vmatpush1.bf16.msra.mxu0 0
        %495 = vmatprep.subr.bf16.mxu0 0
        %496 = vmatpush1.bf16.msra.mxu0 0
        %497 = vmatprep.subr.bf16.mxu0 0
        %498 = vmatpush1.bf16.msra.mxu0 0
        %499 = vmatprep.subr.bf16.mxu0 0
        %500 = vmatpush1.bf16.msra.mxu0 0
        %501 = vmatprep.subr.bf16.mxu0 %v477
        %502 = vmatpush1.bf16.msra.mxu0 %v476
        %503 = vmatprep.subr.bf16.mxu0 %v475
        %504 = vmatpush1.bf16.msra.mxu0 %v474
        %505 = vmatprep.subr.bf16.mxu0 0
        %506 = vmatpush2.bf16.msra.mxu0 0
        %507 = vmatprep.subr.bf16.mxu0 0
        %508 = vmatpush2.bf16.msra.mxu0 0
        %509 = vmatprep.subr.bf16.mxu0 0
        %510 = vmatpush2.bf16.msra.mxu0 0
        %511 = vmatprep.subr.bf16.mxu0 0
        %512 = vmatpush2.bf16.msra.mxu0 0
        %513 = vmatprep.subr.bf16.mxu0 0
        %514 = vmatpush2.bf16.msra.mxu0 0
        %515 = vmatprep.subr.bf16.mxu0 0
        %516 = vmatpush2.bf16.msra.mxu0 0
        %517 = vmatprep.subr.bf16.mxu0 0
        %518 = vmatpush2.bf16.msra.mxu0 0
        %519 = vmatprep.subr.bf16.mxu0 0
        %520 = vmatpush2.bf16.msra.mxu0 0
        %521 = vmatprep.mubr.bf16.mxu0 0
        %522 = vmatmul.mubr.bf16.gmra.mxu0 %v484
        %v523 = vpop.f32.mrf.mxu0
        %v524 = vadd.f32 0.0, %v523
        %v525 = vpop.f32.mrf.mxu0
        %v526 = vadd.f32 0.0, %v525
        %v527 = vpop.f32.mrf.mxu0
        %v528 = vadd.f32 0.0, %v527
        %v529 = vpop.f32.mrf.mxu0
        %v530 = vadd.f32 0.0, %v529
        %531 = vmatprep.mubr.bf16.mxu0 0
        %532 = vmatmul.mubr.bf16.gmra.mxu0 %v487
        %v533 = vpop.f32.mrf.mxu0
        %v534 = vadd.f32 0.0, %v533
        %v535 = vpop.f32.mrf.mxu0
        %v536 = vadd.f32 0.0, %v535
        %v537 = vpop.f32.mrf.mxu0
        %v538 = vadd.f32 0.0, %v537
        %v539 = vpop.f32.mrf.mxu0
        %v540 = vadd.f32 0.0, %v539
        %541 = vdwg.mxu0
        %v546 = vunpack.c.l.b16 %v437
        %v547 = vunpack.c.h.b16 %v437
        %v548 = vunpack.c.l.b16 %v438
        %v549 = vunpack.c.h.b16 %v438
        %v550 = vunpack.c.l.b16 %v439
        %v551 = vunpack.c.h.b16 %v439
        %v552 = vunpack.c.l.b16 %v440
        %v553 = vunpack.c.h.b16 %v440
        %v554 = vpack.c.b16 %v548, %v546
        %v555 = vpack.c.b16 %v549, %v547
        %v556 = vpack.c.b16 %v552, %v550
        %v557 = vpack.c.b16 %v553, %v551
        %v562 = vsel %vm482, %v435, 0
        %v564 = vsel %vm482, %v436, 0
        %566 = vmatprep.subr.bf16.mxu0 0
        %567 = vmatpush1.bf16.msra.mxu0 0
        %568 = vmatprep.subr.bf16.mxu0 0
        %569 = vmatpush1.bf16.msra.mxu0 0
        %570 = vmatprep.subr.bf16.mxu0 0
        %571 = vmatpush1.bf16.msra.mxu0 0
        %572 = vmatprep.subr.bf16.mxu0 0
        %573 = vmatpush1.bf16.msra.mxu0 0
        %574 = vmatprep.subr.bf16.mxu0 0
        %575 = vmatpush1.bf16.msra.mxu0 0
        %576 = vmatprep.subr.bf16.mxu0 0
        %577 = vmatpush1.bf16.msra.mxu0 0
        %578 = vmatprep.subr.bf16.mxu0 %v557
        %579 = vmatpush1.bf16.msra.mxu0 %v556
        %580 = vmatprep.subr.bf16.mxu0 %v555
        %581 = vmatpush1.bf16.msra.mxu0 %v554
        %582 = vmatprep.subr.bf16.mxu0 0
        %583 = vmatpush2.bf16.msra.mxu0 0
        %584 = vmatprep.subr.bf16.mxu0 0
        %585 = vmatpush2.bf16.msra.mxu0 0
        %586 = vmatprep.subr.bf16.mxu0 0
        %587 = vmatpush2.bf16.msra.mxu0 0
        %588 = vmatprep.subr.bf16.mxu0 0
        %589 = vmatpush2.bf16.msra.mxu0 0
        %590 = vmatprep.subr.bf16.mxu0 0
        %591 = vmatpush2.bf16.msra.mxu0 0
        %592 = vmatprep.subr.bf16.mxu0 0
        %593 = vmatpush2.bf16.msra.mxu0 0
        %594 = vmatprep.subr.bf16.mxu0 0
        %595 = vmatpush2.bf16.msra.mxu0 0
        %596 = vmatprep.subr.bf16.mxu0 0
        %597 = vmatpush2.bf16.msra.mxu0 0
        %598 = vmatprep.mubr.bf16.mxu0 0
        %599 = vmatmul.mubr.bf16.gmra.mxu0 %v562
        %v600 = vpop.f32.mrf.mxu0
        %v601 = vadd.f32 %v524, %v600
        %v602 = vpop.f32.mrf.mxu0
        %v603 = vadd.f32 %v526, %v602
        %v604 = vpop.f32.mrf.mxu0
        %v605 = vadd.f32 %v528, %v604
        %v606 = vpop.f32.mrf.mxu0
        %v607 = vadd.f32 %v530, %v606
        %608 = vmatprep.mubr.bf16.mxu0 0
        %609 = vmatmul.mubr.bf16.gmra.mxu0 %v564
        %v610 = vpop.f32.mrf.mxu0
        %v611 = vadd.f32 %v534, %v610
        %v612 = vpop.f32.mrf.mxu0
        %v613 = vadd.f32 %v536, %v612
        %v614 = vpop.f32.mrf.mxu0
        %v615 = vadd.f32 %v538, %v614
        %v616 = vpop.f32.mrf.mxu0
        %v617 = vadd.f32 %v540, %v616
        %618 = vdwg.mxu0
        %s619 = scalar_lea.vmem %s1, 64
        %v620 = vld [vmem:[%s619] sm:$0xff]
        %v621 = vld [vmem:[%s619 + $0x8] sm:$0xff]
        %v622 = vld [vmem:[%s619 + $0x10] sm:$0xff]
        %v623 = vld [vmem:[%s619 + $0x18] sm:$0xff]
        %vm626 = vcmask 1046528
        %v627 = vrot.slane %v435, 1
        %v628 = vrot.slane %v436, 1
        %v629 = vsel %vm626, %v627, %v628
        %v634 = vunpack.c.l.b16 %v620
        %v635 = vunpack.c.h.b16 %v620
        %v636 = vunpack.c.l.b16 %v621
        %v637 = vunpack.c.h.b16 %v621
        %v638 = vunpack.c.l.b16 %v622
        %v639 = vunpack.c.h.b16 %v622
        %v640 = vunpack.c.l.b16 %v623
        %v641 = vunpack.c.h.b16 %v623
        %v642 = vpack.c.b16 %v636, %v634
        %v643 = vpack.c.b16 %v637, %v635
        %v644 = vpack.c.b16 %v640, %v638
        %v645 = vpack.c.b16 %v641, %v639
        %v651 = vsel %vm482, %v629, 0
        %v654 = vsel %vm482, %v628, 0
        %656 = vmatprep.subr.bf16.mxu0 0
        %657 = vmatpush1.bf16.msra.mxu0 0
        %658 = vmatprep.subr.bf16.mxu0 0
        %659 = vmatpush1.bf16.msra.mxu0 0
        %660 = vmatprep.subr.bf16.mxu0 0
        %661 = vmatpush1.bf16.msra.mxu0 0
        %662 = vmatprep.subr.bf16.mxu0 0
        %663 = vmatpush1.bf16.msra.mxu0 0
        %664 = vmatprep.subr.bf16.mxu0 0
        %665 = vmatpush1.bf16.msra.mxu0 0
        %666 = vmatprep.subr.bf16.mxu0 0
        %667 = vmatpush1.bf16.msra.mxu0 0
        %668 = vmatprep.subr.bf16.mxu0 %v645
        %669 = vmatpush1.bf16.msra.mxu0 %v644
        %670 = vmatprep.subr.bf16.mxu0 %v643
        %671 = vmatpush1.bf16.msra.mxu0 %v642
        %672 = vmatprep.subr.bf16.mxu0 0
        %673 = vmatpush2.bf16.msra.mxu0 0
        %674 = vmatprep.subr.bf16.mxu0 0
        %675 = vmatpush2.bf16.msra.mxu0 0
        %676 = vmatprep.subr.bf16.mxu0 0
        %677 = vmatpush2.bf16.msra.mxu0 0
        %678 = vmatprep.subr.bf16.mxu0 0
        %679 = vmatpush2.bf16.msra.mxu0 0
        %680 = vmatprep.subr.bf16.mxu0 0
        %681 = vmatpush2.bf16.msra.mxu0 0
        %682 = vmatprep.subr.bf16.mxu0 0
        %683 = vmatpush2.bf16.msra.mxu0 0
        %684 = vmatprep.subr.bf16.mxu0 0
        %685 = vmatpush2.bf16.msra.mxu0 0
        %686 = vmatprep.subr.bf16.mxu0 0
        %687 = vmatpush2.bf16.msra.mxu0 0
        %688 = vmatprep.mubr.bf16.mxu0 0
        %689 = vmatmul.mubr.bf16.gmra.mxu0 %v651
        %v690 = vpop.f32.mrf.mxu0
        %v691 = vadd.f32 0.0, %v690
        %v692 = vpop.f32.mrf.mxu0
        %v693 = vadd.f32 0.0, %v692
        %v694 = vpop.f32.mrf.mxu0
        %v695 = vadd.f32 0.0, %v694
        %v696 = vpop.f32.mrf.mxu0
        %v697 = vadd.f32 0.0, %v696
        %698 = vmatprep.mubr.bf16.mxu0 0
        %699 = vmatmul.mubr.bf16.gmra.mxu0 %v654
        %v700 = vpop.f32.mrf.mxu0
        %v701 = vadd.f32 0.0, %v700
        %v702 = vpop.f32.mrf.mxu0
        %v703 = vadd.f32 0.0, %v702
        %v704 = vpop.f32.mrf.mxu0
        %v705 = vadd.f32 0.0, %v704
        %v706 = vpop.f32.mrf.mxu0
        %v707 = vadd.f32 0.0, %v706
        %708 = vdwg.mxu0
        %v709 = vadd.f32 %v601, %v691
        %v710 = vadd.f32 %v603, %v693
        %v711 = vadd.f32 %v605, %v695
        %v712 = vadd.f32 %v607, %v697
        %v713 = vadd.f32 %v611, %v701
        %v714 = vadd.f32 %v613, %v703
        %v715 = vadd.f32 %v615, %v705
        %v716 = vadd.f32 %v617, %v707
        %s717 = scalar_lea.vmem %s1, 96
        %v718 = vld [vmem:[%s717] sm:$0xff]
        %v719 = vld [vmem:[%s717 + $0x8] sm:$0xff]
        %v720 = vld [vmem:[%s717 + $0x10] sm:$0xff]
        %v721 = vld [vmem:[%s717 + $0x18] sm:$0xff]
        %vm722 = vsmask.f32 6400
        %v723 = vrot.slane %v448, 1
        %v724 = vrot.slane %v450, 2
        %v725 = vor.u32 %v723, %v724
        %v726 = vrot.slane %v459, 1
        %v727 = vrot.slane %v455, 2
        %v728 = vor.u32 %v726, %v727
        %v729 = vsel %vm722, %v725, %v728
        %v734 = vunpack.c.l.b16 %v718
        %v735 = vunpack.c.h.b16 %v718
        %v736 = vunpack.c.l.b16 %v719
        %v737 = vunpack.c.h.b16 %v719
        %v738 = vunpack.c.l.b16 %v720
        %v739 = vunpack.c.h.b16 %v720
        %v740 = vunpack.c.l.b16 %v721
        %v741 = vunpack.c.h.b16 %v721
        %v742 = vpack.c.b16 %v736, %v734
        %v743 = vpack.c.b16 %v737, %v735
        %v744 = vpack.c.b16 %v740, %v738
        %v745 = vpack.c.b16 %v741, %v739
        %v751 = vsel %vm482, %v729, 0
        %v754 = vsel %vm482, %v728, 0
        %756 = vmatprep.subr.bf16.mxu0 0
        %757 = vmatpush1.bf16.msra.mxu0 0
        %758 = vmatprep.subr.bf16.mxu0 0
        %759 = vmatpush1.bf16.msra.mxu0 0
        %760 = vmatprep.subr.bf16.mxu0 0
        %761 = vmatpush1.bf16.msra.mxu0 0
        %762 = vmatprep.subr.bf16.mxu0 0
        %763 = vmatpush1.bf16.msra.mxu0 0
        %764 = vmatprep.subr.bf16.mxu0 0
        %765 = vmatpush1.bf16.msra.mxu0 0
        %766 = vmatprep.subr.bf16.mxu0 0
        %767 = vmatpush1.bf16.msra.mxu0 0
        %768 = vmatprep.subr.bf16.mxu0 %v745
        %769 = vmatpush1.bf16.msra.mxu0 %v744
        %770 = vmatprep.subr.bf16.mxu0 %v743
        %771 = vmatpush1.bf16.msra.mxu0 %v742
        %772 = vmatprep.subr.bf16.mxu0 0
        %773 = vmatpush2.bf16.msra.mxu0 0
        %774 = vmatprep.subr.bf16.mxu0 0
        %775 = vmatpush2.bf16.msra.mxu0 0
        %776 = vmatprep.subr.bf16.mxu0 0
        %777 = vmatpush2.bf16.msra.mxu0 0
        %778 = vmatprep.subr.bf16.mxu0 0
        %779 = vmatpush2.bf16.msra.mxu0 0
        %780 = vmatprep.subr.bf16.mxu0 0
        %781 = vmatpush2.bf16.msra.mxu0 0
        %782 = vmatprep.subr.bf16.mxu0 0
        %783 = vmatpush2.bf16.msra.mxu0 0
        %784 = vmatprep.subr.bf16.mxu0 0
        %785 = vmatpush2.bf16.msra.mxu0 0
        %786 = vmatprep.subr.bf16.mxu0 0
        %787 = vmatpush2.bf16.msra.mxu0 0
        %788 = vmatprep.mubr.bf16.mxu0 0
        %789 = vmatmul.mubr.bf16.gmra.mxu0 %v751
        %v790 = vpop.f32.mrf.mxu0
        %v791 = vadd.f32 0.0, %v790
        %v792 = vpop.f32.mrf.mxu0
        %v793 = vadd.f32 0.0, %v792
        %v794 = vpop.f32.mrf.mxu0
        %v795 = vadd.f32 0.0, %v794
        %v796 = vpop.f32.mrf.mxu0
        %v797 = vadd.f32 0.0, %v796
        %798 = vmatprep.mubr.bf16.mxu0 0
        %799 = vmatmul.mubr.bf16.gmra.mxu0 %v754
        %v800 = vpop.f32.mrf.mxu0
        %v801 = vadd.f32 0.0, %v800
        %v802 = vpop.f32.mrf.mxu0
        %v803 = vadd.f32 0.0, %v802
        %v804 = vpop.f32.mrf.mxu0
        %v805 = vadd.f32 0.0, %v804
        %v806 = vpop.f32.mrf.mxu0
        %v807 = vadd.f32 0.0, %v806
        %808 = vdwg.mxu0
        %v809 = vadd.f32 %v709, %v791
        %v810 = vadd.f32 %v710, %v793
        %v811 = vadd.f32 %v711, %v795
        %v812 = vadd.f32 %v712, %v797
        %v813 = vadd.f32 %v713, %v801
        %v814 = vadd.f32 %v714, %v803
        %v815 = vadd.f32 %v715, %v805
        %v816 = vadd.f32 %v716, %v807
        %s817 = scalar_lea.vmem %s1, 128
        %v818 = vld [vmem:[%s817] sm:$0xff]
        %v819 = vld [vmem:[%s817 + $0x8] sm:$0xff]
        %v820 = vld [vmem:[%s817 + $0x10] sm:$0xff]
        %v821 = vld [vmem:[%s817 + $0x18] sm:$0xff]
        %vm822 = vcmask 1045504
        %v823 = vrot.slane %v435, 2
        %v824 = vrot.slane %v436, 2
        %v825 = vsel %vm822, %v823, %v824
        %v830 = vunpack.c.l.b16 %v818
        %v831 = vunpack.c.h.b16 %v818
        %v832 = vunpack.c.l.b16 %v819
        %v833 = vunpack.c.h.b16 %v819
        %v834 = vunpack.c.l.b16 %v820
        %v835 = vunpack.c.h.b16 %v820
        %v836 = vunpack.c.l.b16 %v821
        %v837 = vunpack.c.h.b16 %v821
        %v838 = vpack.c.b16 %v832, %v830
        %v839 = vpack.c.b16 %v833, %v831
        %v840 = vpack.c.b16 %v836, %v834
        %v841 = vpack.c.b16 %v837, %v835
        %v847 = vsel %vm482, %v825, 0
        %v850 = vsel %vm482, %v824, 0
        %852 = vmatprep.subr.bf16.mxu0 0
        %853 = vmatpush1.bf16.msra.mxu0 0
        %854 = vmatprep.subr.bf16.mxu0 0
        %855 = vmatpush1.bf16.msra.mxu0 0
        %856 = vmatprep.subr.bf16.mxu0 0
        %857 = vmatpush1.bf16.msra.mxu0 0
        %858 = vmatprep.subr.bf16.mxu0 0
        %859 = vmatpush1.bf16.msra.mxu0 0
        %860 = vmatprep.subr.bf16.mxu0 0
        %861 = vmatpush1.bf16.msra.mxu0 0
        %862 = vmatprep.subr.bf16.mxu0 0
        %863 = vmatpush1.bf16.msra.mxu0 0
        %864 = vmatprep.subr.bf16.mxu0 %v841
        %865 = vmatpush1.bf16.msra.mxu0 %v840
        %866 = vmatprep.subr.bf16.mxu0 %v839
        %867 = vmatpush1.bf16.msra.mxu0 %v838
        %868 = vmatprep.subr.bf16.mxu0 0
        %869 = vmatpush2.bf16.msra.mxu0 0
        %870 = vmatprep.subr.bf16.mxu0 0
        %871 = vmatpush2.bf16.msra.mxu0 0
        %872 = vmatprep.subr.bf16.mxu0 0
        %873 = vmatpush2.bf16.msra.mxu0 0
        %874 = vmatprep.subr.bf16.mxu0 0
        %875 = vmatpush2.bf16.msra.mxu0 0
        %876 = vmatprep.subr.bf16.mxu0 0
        %877 = vmatpush2.bf16.msra.mxu0 0
        %878 = vmatprep.subr.bf16.mxu0 0
        %879 = vmatpush2.bf16.msra.mxu0 0
        %880 = vmatprep.subr.bf16.mxu0 0
        %881 = vmatpush2.bf16.msra.mxu0 0
        %882 = vmatprep.subr.bf16.mxu0 0
        %883 = vmatpush2.bf16.msra.mxu0 0
        %884 = vmatprep.mubr.bf16.mxu0 0
        %885 = vmatmul.mubr.bf16.gmra.mxu0 %v847
        %v886 = vpop.f32.mrf.mxu0
        %v887 = vadd.f32 0.0, %v886
        %v888 = vpop.f32.mrf.mxu0
        %v889 = vadd.f32 0.0, %v888
        %v890 = vpop.f32.mrf.mxu0
        %v891 = vadd.f32 0.0, %v890
        %v892 = vpop.f32.mrf.mxu0
        %v893 = vadd.f32 0.0, %v892
        %894 = vmatprep.mubr.bf16.mxu0 0
        %895 = vmatmul.mubr.bf16.gmra.mxu0 %v850
        %v896 = vpop.f32.mrf.mxu0
        %v897 = vadd.f32 0.0, %v896
        %v898 = vpop.f32.mrf.mxu0
        %v899 = vadd.f32 0.0, %v898
        %v900 = vpop.f32.mrf.mxu0
        %v901 = vadd.f32 0.0, %v900
        %v902 = vpop.f32.mrf.mxu0
        %v903 = vadd.f32 0.0, %v902
        %904 = vdwg.mxu0
        %v905 = vadd.f32 %v809, %v887
        %v906 = vadd.f32 %v810, %v889
        %v907 = vadd.f32 %v811, %v891
        %v908 = vadd.f32 %v812, %v893
        %v909 = vadd.f32 %v813, %v897
        %v910 = vadd.f32 %v814, %v899
        %v911 = vadd.f32 %v815, %v901
        %v912 = vadd.f32 %v816, %v903
        %v913 = vmax.f32 %v905, %v906
        %v914 = vmax.f32 %v907, %v908
        %v915 = vmax.f32 %v909, %v910
        %v916 = vmax.f32 %v911, %v912
        %v918 = vlaneseq
        %v919 = vshrl.u32 %v918, 7
        %v920 = vsub.s32 0, %v919
        %v921 = vrot.slane %v429, %v920
        %v923 = vadd.f32 %v913, %v921
        %v924 = vadd.f32 %v914, %v921
        %v925 = vadd.f32 %v915, %v921
        %v926 = vadd.f32 %v916, %v921
        %v927 = vmax.f32 %v923, 0.0
        %v928 = vmax.f32 %v924, 0.0
        %v929 = vmax.f32 %v925, 0.0
        %v930 = vmax.f32 %v926, 0.0
        %931 = vst [vmem:[#allocation2] sm:$0xff] %v927
        %932 = vst [vmem:[#allocation2 + $0x8] sm:$0xff] %v928
        %933 = vst [vmem:[#allocation2 + $0x10] sm:$0xff] %v929
        %934 = vst [vmem:[#allocation2 + $0x18] sm:$0xf] %v930
        %v935 = vld [vmem:[#allocation2] ss:$2 sm:$0xff]
        %s936 = scalar_lea.vmem [#allocation2], 16
        %v937 = vld [vmem:[%s936] ss:$2 sm:$0x3f]
        %s938 = scalar_lea.vmem [#allocation2], 1
        %v939 = vld [vmem:[%s938] ss:$2 sm:$0xff]
        %s940 = scalar_lea.vmem [#allocation2], 17
        %v941 = vld [vmem:[%s940] ss:$2 sm:$0x3f]
        %v942 = vmax.f32 %v935, %v939
        %v943 = vmax.f32 %v937, %v941
        %v944 = vpack.c.bf16 %v943, %v942
        %v945 = vld [vmem:[#allocation5] sm:$0xff]
        %v946 = vld [vmem:[#allocation5 + $0x8] sm:$0xff]
        %v947 = vld [vmem:[#allocation5 + $0x10] sm:$0xff]
        %v948 = vld [vmem:[#allocation5 + $0x18] sm:$0xff]
        %v949 = vld [vmem:[#allocation5 + $0x20] sm:$0xff]
        %v950 = vld [vmem:[#allocation5 + $0x28] sm:$0xff]
        %v951 = vld [vmem:[#allocation5 + $0x30] sm:$0xff]
        %v952 = vld [vmem:[#allocation5 + $0x38] sm:$0xff]
        %v953 = vld [vmem:[#allocation5 + $0x40] sm:$0xff]
        %v954 = vld [vmem:[#allocation5 + $0x48] sm:$0xff]
        %v955 = vld [vmem:[#allocation5 + $0x50] sm:$0xff]
        %v956 = vld [vmem:[#allocation5 + $0x58] sm:$0xff]
        %v957 = vld [vmem:[#allocation5 + $0x60] sm:$0xff]
        %v958 = vld [vmem:[#allocation5 + $0x68] sm:$0xff]
        %v959 = vld [vmem:[#allocation5 + $0x70] sm:$0xff]
        %v960 = vld [vmem:[#allocation5 + $0x78] sm:$0xff]
        %s961 = scalar_lea.vmem [#allocation5], 128
        %v962 = vld [vmem:[%s961] sm:$0xff]
        %v963 = vld [vmem:[%s961 + $0x8] sm:$0xff]
        %v964 = vld [vmem:[%s961 + $0x10] sm:$0xff]
        %v965 = vld [vmem:[%s961 + $0x18] sm:$0xff]
        %v966 = vld [vmem:[%s961 + $0x20] sm:$0xff]
        %v967 = vld [vmem:[%s961 + $0x28] sm:$0xff]
        %v968 = vld [vmem:[%s961 + $0x30] sm:$0xff]
        %v969 = vld [vmem:[%s961 + $0x38] sm:$0xff]
        %v970 = vld [vmem:[%s961 + $0x40] sm:$0xff]
        %v971 = vld [vmem:[%s961 + $0x48] sm:$0xff]
        %v972 = vld [vmem:[%s961 + $0x50] sm:$0xff]
        %v973 = vld [vmem:[%s961 + $0x58] sm:$0xff]
        %v974 = vld [vmem:[%s961 + $0x60] sm:$0xff]
        %v975 = vld [vmem:[%s961 + $0x68] sm:$0xff]
        %v976 = vld [vmem:[%s961 + $0x70] sm:$0xff]
        %v977 = vld [vmem:[%s961 + $0x78] sm:$0xff]
        %v979 = vshrl.u32 %v944, 16
        %v981 = vshll.u32 %v944, 16
        %v983 = vrot.slane %v981, 1
        %v984 = vor.u32 %v979, %v983
        %v1002 = vunpack.c.l.b16 %v962
        %v1003 = vunpack.c.h.b16 %v962
        %v1004 = vunpack.c.l.b16 %v963
        %v1005 = vunpack.c.h.b16 %v963
        %v1006 = vunpack.c.l.b16 %v964
        %v1007 = vunpack.c.h.b16 %v964
        %v1008 = vunpack.c.l.b16 %v965
        %v1009 = vunpack.c.h.b16 %v965
        %v1010 = vunpack.c.l.b16 %v966
        %v1011 = vunpack.c.h.b16 %v966
        %v1012 = vunpack.c.l.b16 %v967
        %v1013 = vunpack.c.h.b16 %v967
        %v1014 = vunpack.c.l.b16 %v968
        %v1015 = vunpack.c.h.b16 %v968
        %v1016 = vunpack.c.l.b16 %v969
        %v1017 = vunpack.c.h.b16 %v969
        %v1018 = vunpack.c.l.b16 %v970
        %v1019 = vunpack.c.h.b16 %v970
        %v1020 = vunpack.c.l.b16 %v971
        %v1021 = vunpack.c.h.b16 %v971
        %v1022 = vunpack.c.l.b16 %v972
        %v1023 = vunpack.c.h.b16 %v972
        %v1024 = vunpack.c.l.b16 %v973
        %v1025 = vunpack.c.h.b16 %v973
        %v1026 = vunpack.c.l.b16 %v974
        %v1027 = vunpack.c.h.b16 %v974
        %v1028 = vunpack.c.l.b16 %v975
        %v1029 = vunpack.c.h.b16 %v975
        %v1030 = vunpack.c.l.b16 %v976
        %v1031 = vunpack.c.h.b16 %v976
        %v1032 = vunpack.c.l.b16 %v977
        %v1033 = vunpack.c.h.b16 %v977
        %v1034 = vpack.c.b16 %v1004, %v1002
        %v1035 = vpack.c.b16 %v1005, %v1003
        %v1036 = vpack.c.b16 %v1008, %v1006
        %v1037 = vpack.c.b16 %v1009, %v1007
        %v1038 = vpack.c.b16 %v1012, %v1010
        %v1039 = vpack.c.b16 %v1013, %v1011
        %v1040 = vpack.c.b16 %v1016, %v1014
        %v1041 = vpack.c.b16 %v1017, %v1015
        %v1042 = vpack.c.b16 %v1020, %v1018
        %v1043 = vpack.c.b16 %v1021, %v1019
        %v1044 = vpack.c.b16 %v1024, %v1022
        %v1045 = vpack.c.b16 %v1025, %v1023
        %v1046 = vpack.c.b16 %v1028, %v1026
        %v1047 = vpack.c.b16 %v1029, %v1027
        %v1048 = vpack.c.b16 %v1032, %v1030
        %v1049 = vpack.c.b16 %v1033, %v1031
        %1066 = vmatprep.subr.bf16.mxu0 %v1049
        %1067 = vmatpush1.bf16.msra.mxu0 %v1048
        %1068 = vmatprep.subr.bf16.mxu0 %v1047
        %1069 = vmatpush1.bf16.msra.mxu0 %v1046
        %1070 = vmatprep.subr.bf16.mxu0 %v1045
        %1071 = vmatpush1.bf16.msra.mxu0 %v1044
        %1072 = vmatprep.subr.bf16.mxu0 %v1043
        %1073 = vmatpush1.bf16.msra.mxu0 %v1042
        %1074 = vmatprep.subr.bf16.mxu0 %v1041
        %1075 = vmatpush1.bf16.msra.mxu0 %v1040
        %1076 = vmatprep.subr.bf16.mxu0 %v1039
        %1077 = vmatpush1.bf16.msra.mxu0 %v1038
        %1078 = vmatprep.subr.bf16.mxu0 %v1037
        %1079 = vmatpush1.bf16.msra.mxu0 %v1036
        %1080 = vmatprep.subr.bf16.mxu0 %v1035
        %1081 = vmatpush1.bf16.msra.mxu0 %v1034
        %1082 = vmatprep.subr.bf16.mxu0 0
        %1083 = vmatpush2.bf16.msra.mxu0 0
        %1084 = vmatprep.subr.bf16.mxu0 0
        %1085 = vmatpush2.bf16.msra.mxu0 0
        %1086 = vmatprep.subr.bf16.mxu0 0
        %1087 = vmatpush2.bf16.msra.mxu0 0
        %1088 = vmatprep.subr.bf16.mxu0 0
        %1089 = vmatpush2.bf16.msra.mxu0 0
        %1090 = vmatprep.subr.bf16.mxu0 0
        %1091 = vmatpush2.bf16.msra.mxu0 0
        %1092 = vmatprep.subr.bf16.mxu0 0
        %1093 = vmatpush2.bf16.msra.mxu0 0
        %1094 = vmatprep.subr.bf16.mxu0 0
        %1095 = vmatpush2.bf16.msra.mxu0 0
        %1096 = vmatprep.subr.bf16.mxu0 0
        %1097 = vmatpush2.bf16.msra.mxu0 0
        %1098 = vmatprep.mubr.bf16.mxu0 0
        %1099 = vmatmul.mubr.bf16.gmra.mxu0 %v984
        %v1100 = vpop.f32.mrf.mxu0
        %v1101 = vadd.f32 0.0, %v1100
        %v1102 = vpop.f32.mrf.mxu0
        %v1103 = vadd.f32 0.0, %v1102
        %v1104 = vpop.f32.mrf.mxu0
        %v1105 = vadd.f32 0.0, %v1104
        %v1106 = vpop.f32.mrf.mxu0
        %v1107 = vadd.f32 0.0, %v1106
        %1108 = vdwg.mxu0
        %v1125 = vunpack.c.l.b16 %v945
        %v1126 = vunpack.c.h.b16 %v945
        %v1127 = vunpack.c.l.b16 %v946
        %v1128 = vunpack.c.h.b16 %v946
        %v1129 = vunpack.c.l.b16 %v947
        %v1130 = vunpack.c.h.b16 %v947
        %v1131 = vunpack.c.l.b16 %v948
        %v1132 = vunpack.c.h.b16 %v948
        %v1133 = vunpack.c.l.b16 %v949
        %v1134 = vunpack.c.h.b16 %v949
        %v1135 = vunpack.c.l.b16 %v950
        %v1136 = vunpack.c.h.b16 %v950
        %v1137 = vunpack.c.l.b16 %v951
        %v1138 = vunpack.c.h.b16 %v951
        %v1139 = vunpack.c.l.b16 %v952
        %v1140 = vunpack.c.h.b16 %v952
        %v1141 = vunpack.c.l.b16 %v953
        %v1142 = vunpack.c.h.b16 %v953
        %v1143 = vunpack.c.l.b16 %v954
        %v1144 = vunpack.c.h.b16 %v954
        %v1145 = vunpack.c.l.b16 %v955
        %v1146 = vunpack.c.h.b16 %v955
        %v1147 = vunpack.c.l.b16 %v956
        %v1148 = vunpack.c.h.b16 %v956
        %v1149 = vunpack.c.l.b16 %v957
        %v1150 = vunpack.c.h.b16 %v957
        %v1151 = vunpack.c.l.b16 %v958
        %v1152 = vunpack.c.h.b16 %v958
        %v1153 = vunpack.c.l.b16 %v959
        %v1154 = vunpack.c.h.b16 %v959
        %v1155 = vunpack.c.l.b16 %v960
        %v1156 = vunpack.c.h.b16 %v960
        %v1157 = vpack.c.b16 %v1127, %v1125
        %v1158 = vpack.c.b16 %v1128, %v1126
        %v1159 = vpack.c.b16 %v1131, %v1129
        %v1160 = vpack.c.b16 %v1132, %v1130
        %v1161 = vpack.c.b16 %v1135, %v1133
        %v1162 = vpack.c.b16 %v1136, %v1134
        %v1163 = vpack.c.b16 %v1139, %v1137
        %v1164 = vpack.c.b16 %v1140, %v1138
        %v1165 = vpack.c.b16 %v1143, %v1141
        %v1166 = vpack.c.b16 %v1144, %v1142
        %v1167 = vpack.c.b16 %v1147, %v1145
        %v1168 = vpack.c.b16 %v1148, %v1146
        %v1169 = vpack.c.b16 %v1151, %v1149
        %v1170 = vpack.c.b16 %v1152, %v1150
        %v1171 = vpack.c.b16 %v1155, %v1153
        %v1172 = vpack.c.b16 %v1156, %v1154
        %1189 = vmatprep.subr.bf16.mxu0 %v1172
        %1190 = vmatpush1.bf16.msra.mxu0 %v1171
        %1191 = vmatprep.subr.bf16.mxu0 %v1170
        %1192 = vmatpush1.bf16.msra.mxu0 %v1169
        %1193 = vmatprep.subr.bf16.mxu0 %v1168
        %1194 = vmatpush1.bf16.msra.mxu0 %v1167
        %1195 = vmatprep.subr.bf16.mxu0 %v1166
        %1196 = vmatpush1.bf16.msra.mxu0 %v1165
        %1197 = vmatprep.subr.bf16.mxu0 %v1164
        %1198 = vmatpush1.bf16.msra.mxu0 %v1163
        %1199 = vmatprep.subr.bf16.mxu0 %v1162
        %1200 = vmatpush1.bf16.msra.mxu0 %v1161
        %1201 = vmatprep.subr.bf16.mxu0 %v1160
        %1202 = vmatpush1.bf16.msra.mxu0 %v1159
        %1203 = vmatprep.subr.bf16.mxu0 %v1158
        %1204 = vmatpush1.bf16.msra.mxu0 %v1157
        %1205 = vmatprep.subr.bf16.mxu0 0
        %1206 = vmatpush2.bf16.msra.mxu0 0
        %1207 = vmatprep.subr.bf16.mxu0 0
        %1208 = vmatpush2.bf16.msra.mxu0 0
        %1209 = vmatprep.subr.bf16.mxu0 0
        %1210 = vmatpush2.bf16.msra.mxu0 0
        %1211 = vmatprep.subr.bf16.mxu0 0
        %1212 = vmatpush2.bf16.msra.mxu0 0
        %1213 = vmatprep.subr.bf16.mxu0 0
        %1214 = vmatpush2.bf16.msra.mxu0 0
        %1215 = vmatprep.subr.bf16.mxu0 0
        %1216 = vmatpush2.bf16.msra.mxu0 0
        %1217 = vmatprep.subr.bf16.mxu0 0
        %1218 = vmatpush2.bf16.msra.mxu0 0
        %1219 = vmatprep.subr.bf16.mxu0 0
        %1220 = vmatpush2.bf16.msra.mxu0 0
        %1221 = vmatprep.mubr.bf16.mxu0 0
        %1222 = vmatmul.mubr.bf16.gmra.mxu0 %v944
        %v1223 = vpop.f32.mrf.mxu0
        %v1224 = vadd.f32 %v1101, %v1223
        %v1225 = vpop.f32.mrf.mxu0
        %v1226 = vadd.f32 %v1103, %v1225
        %v1227 = vpop.f32.mrf.mxu0
        %v1228 = vadd.f32 %v1105, %v1227
        %v1229 = vpop.f32.mrf.mxu0
        %v1230 = vadd.f32 %v1107, %v1229
        %1231 = vdwg.mxu0
        %s1232 = scalar_lea.vmem [#allocation5], 256
        %v1233 = vld [vmem:[%s1232] sm:$0xff]
        %v1234 = vld [vmem:[%s1232 + $0x8] sm:$0xff]
        %v1235 = vld [vmem:[%s1232 + $0x10] sm:$0xff]
        %v1236 = vld [vmem:[%s1232 + $0x18] sm:$0xff]
        %v1237 = vld [vmem:[%s1232 + $0x20] sm:$0xff]
        %v1238 = vld [vmem:[%s1232 + $0x28] sm:$0xff]
        %v1239 = vld [vmem:[%s1232 + $0x30] sm:$0xff]
        %v1240 = vld [vmem:[%s1232 + $0x38] sm:$0xff]
        %v1241 = vld [vmem:[%s1232 + $0x40] sm:$0xff]
        %v1242 = vld [vmem:[%s1232 + $0x48] sm:$0xff]
        %v1243 = vld [vmem:[%s1232 + $0x50] sm:$0xff]
        %v1244 = vld [vmem:[%s1232 + $0x58] sm:$0xff]
        %v1245 = vld [vmem:[%s1232 + $0x60] sm:$0xff]
        %v1246 = vld [vmem:[%s1232 + $0x68] sm:$0xff]
        %v1247 = vld [vmem:[%s1232 + $0x70] sm:$0xff]
        %v1248 = vld [vmem:[%s1232 + $0x78] sm:$0xff]
        %v1250 = vrot.slane %v944, 1
        %v1268 = vunpack.c.l.b16 %v1233
        %v1269 = vunpack.c.h.b16 %v1233
        %v1270 = vunpack.c.l.b16 %v1234
        %v1271 = vunpack.c.h.b16 %v1234
        %v1272 = vunpack.c.l.b16 %v1235
        %v1273 = vunpack.c.h.b16 %v1235
        %v1274 = vunpack.c.l.b16 %v1236
        %v1275 = vunpack.c.h.b16 %v1236
        %v1276 = vunpack.c.l.b16 %v1237
        %v1277 = vunpack.c.h.b16 %v1237
        %v1278 = vunpack.c.l.b16 %v1238
        %v1279 = vunpack.c.h.b16 %v1238
        %v1280 = vunpack.c.l.b16 %v1239
        %v1281 = vunpack.c.h.b16 %v1239
        %v1282 = vunpack.c.l.b16 %v1240
        %v1283 = vunpack.c.h.b16 %v1240
        %v1284 = vunpack.c.l.b16 %v1241
        %v1285 = vunpack.c.h.b16 %v1241
        %v1286 = vunpack.c.l.b16 %v1242
        %v1287 = vunpack.c.h.b16 %v1242
        %v1288 = vunpack.c.l.b16 %v1243
        %v1289 = vunpack.c.h.b16 %v1243
        %v1290 = vunpack.c.l.b16 %v1244
        %v1291 = vunpack.c.h.b16 %v1244
        %v1292 = vunpack.c.l.b16 %v1245
        %v1293 = vunpack.c.h.b16 %v1245
        %v1294 = vunpack.c.l.b16 %v1246
        %v1295 = vunpack.c.h.b16 %v1246
        %v1296 = vunpack.c.l.b16 %v1247
        %v1297 = vunpack.c.h.b16 %v1247
        %v1298 = vunpack.c.l.b16 %v1248
        %v1299 = vunpack.c.h.b16 %v1248
        %v1300 = vpack.c.b16 %v1270, %v1268
        %v1301 = vpack.c.b16 %v1271, %v1269
        %v1302 = vpack.c.b16 %v1274, %v1272
        %v1303 = vpack.c.b16 %v1275, %v1273
        %v1304 = vpack.c.b16 %v1278, %v1276
        %v1305 = vpack.c.b16 %v1279, %v1277
        %v1306 = vpack.c.b16 %v1282, %v1280
        %v1307 = vpack.c.b16 %v1283, %v1281
        %v1308 = vpack.c.b16 %v1286, %v1284
        %v1309 = vpack.c.b16 %v1287, %v1285
        %v1310 = vpack.c.b16 %v1290, %v1288
        %v1311 = vpack.c.b16 %v1291, %v1289
        %v1312 = vpack.c.b16 %v1294, %v1292
        %v1313 = vpack.c.b16 %v1295, %v1293
        %v1314 = vpack.c.b16 %v1298, %v1296
        %v1315 = vpack.c.b16 %v1299, %v1297
        %1332 = vmatprep.subr.bf16.mxu0 %v1315
        %1333 = vmatpush1.bf16.msra.mxu0 %v1314
        %1334 = vmatprep.subr.bf16.mxu0 %v1313
        %1335 = vmatpush1.bf16.msra.mxu0 %v1312
        %1336 = vmatprep.subr.bf16.mxu0 %v1311
        %1337 = vmatpush1.bf16.msra.mxu0 %v1310
        %1338 = vmatprep.subr.bf16.mxu0 %v1309
        %1339 = vmatpush1.bf16.msra.mxu0 %v1308
        %1340 = vmatprep.subr.bf16.mxu0 %v1307
        %1341 = vmatpush1.bf16.msra.mxu0 %v1306
        %1342 = vmatprep.subr.bf16.mxu0 %v1305
        %1343 = vmatpush1.bf16.msra.mxu0 %v1304
        %1344 = vmatprep.subr.bf16.mxu0 %v1303
        %1345 = vmatpush1.bf16.msra.mxu0 %v1302
        %1346 = vmatprep.subr.bf16.mxu0 %v1301
        %1347 = vmatpush1.bf16.msra.mxu0 %v1300
        %1348 = vmatprep.subr.bf16.mxu0 0
        %1349 = vmatpush2.bf16.msra.mxu0 0
        %1350 = vmatprep.subr.bf16.mxu0 0
        %1351 = vmatpush2.bf16.msra.mxu0 0
        %1352 = vmatprep.subr.bf16.mxu0 0
        %1353 = vmatpush2.bf16.msra.mxu0 0
        %1354 = vmatprep.subr.bf16.mxu0 0
        %1355 = vmatpush2.bf16.msra.mxu0 0
        %1356 = vmatprep.subr.bf16.mxu0 0
        %1357 = vmatpush2.bf16.msra.mxu0 0
        %1358 = vmatprep.subr.bf16.mxu0 0
        %1359 = vmatpush2.bf16.msra.mxu0 0
        %1360 = vmatprep.subr.bf16.mxu0 0
        %1361 = vmatpush2.bf16.msra.mxu0 0
        %1362 = vmatprep.subr.bf16.mxu0 0
        %1363 = vmatpush2.bf16.msra.mxu0 0
        %1364 = vmatprep.mubr.bf16.mxu0 0
        %1365 = vmatmul.mubr.bf16.gmra.mxu0 %v1250
        %v1366 = vpop.f32.mrf.mxu0
        %v1367 = vadd.f32 0.0, %v1366
        %v1368 = vpop.f32.mrf.mxu0
        %v1369 = vadd.f32 0.0, %v1368
        %v1370 = vpop.f32.mrf.mxu0
        %v1371 = vadd.f32 0.0, %v1370
        %v1372 = vpop.f32.mrf.mxu0
        %v1373 = vadd.f32 0.0, %v1372
        %1374 = vdwg.mxu0
        %v1375 = vadd.f32 %v1224, %v1367
        %v1376 = vadd.f32 %v1226, %v1369
        %v1377 = vadd.f32 %v1228, %v1371
        %v1378 = vadd.f32 %v1230, %v1373
        %s1379 = scalar_lea.vmem [#allocation5], 384
        %v1380 = vld [vmem:[%s1379] sm:$0xff]
        %v1381 = vld [vmem:[%s1379 + $0x8] sm:$0xff]
        %v1382 = vld [vmem:[%s1379 + $0x10] sm:$0xff]
        %v1383 = vld [vmem:[%s1379 + $0x18] sm:$0xff]
        %v1384 = vld [vmem:[%s1379 + $0x20] sm:$0xff]
        %v1385 = vld [vmem:[%s1379 + $0x28] sm:$0xff]
        %v1386 = vld [vmem:[%s1379 + $0x30] sm:$0xff]
        %v1387 = vld [vmem:[%s1379 + $0x38] sm:$0xff]
        %v1388 = vld [vmem:[%s1379 + $0x40] sm:$0xff]
        %v1389 = vld [vmem:[%s1379 + $0x48] sm:$0xff]
        %v1390 = vld [vmem:[%s1379 + $0x50] sm:$0xff]
        %v1391 = vld [vmem:[%s1379 + $0x58] sm:$0xff]
        %v1392 = vld [vmem:[%s1379 + $0x60] sm:$0xff]
        %v1393 = vld [vmem:[%s1379 + $0x68] sm:$0xff]
        %v1394 = vld [vmem:[%s1379 + $0x70] sm:$0xff]
        %v1395 = vld [vmem:[%s1379 + $0x78] sm:$0xff]
        %v1396 = vrot.slane %v979, 1
        %v1397 = vrot.slane %v981, 2
        %v1398 = vor.u32 %v1396, %v1397
        %v1416 = vunpack.c.l.b16 %v1380
        %v1417 = vunpack.c.h.b16 %v1380
        %v1418 = vunpack.c.l.b16 %v1381
        %v1419 = vunpack.c.h.b16 %v1381
        %v1420 = vunpack.c.l.b16 %v1382
        %v1421 = vunpack.c.h.b16 %v1382
        %v1422 = vunpack.c.l.b16 %v1383
        %v1423 = vunpack.c.h.b16 %v1383
        %v1424 = vunpack.c.l.b16 %v1384
        %v1425 = vunpack.c.h.b16 %v1384
        %v1426 = vunpack.c.l.b16 %v1385
        %v1427 = vunpack.c.h.b16 %v1385
        %v1428 = vunpack.c.l.b16 %v1386
        %v1429 = vunpack.c.h.b16 %v1386
        %v1430 = vunpack.c.l.b16 %v1387
        %v1431 = vunpack.c.h.b16 %v1387
        %v1432 = vunpack.c.l.b16 %v1388
        %v1433 = vunpack.c.h.b16 %v1388
        %v1434 = vunpack.c.l.b16 %v1389
        %v1435 = vunpack.c.h.b16 %v1389
        %v1436 = vunpack.c.l.b16 %v1390
        %v1437 = vunpack.c.h.b16 %v1390
        %v1438 = vunpack.c.l.b16 %v1391
        %v1439 = vunpack.c.h.b16 %v1391
        %v1440 = vunpack.c.l.b16 %v1392
        %v1441 = vunpack.c.h.b16 %v1392
        %v1442 = vunpack.c.l.b16 %v1393
        %v1443 = vunpack.c.h.b16 %v1393
        %v1444 = vunpack.c.l.b16 %v1394
        %v1445 = vunpack.c.h.b16 %v1394
        %v1446 = vunpack.c.l.b16 %v1395
        %v1447 = vunpack.c.h.b16 %v1395
        %v1448 = vpack.c.b16 %v1418, %v1416
        %v1449 = vpack.c.b16 %v1419, %v1417
        %v1450 = vpack.c.b16 %v1422, %v1420
        %v1451 = vpack.c.b16 %v1423, %v1421
        %v1452 = vpack.c.b16 %v1426, %v1424
        %v1453 = vpack.c.b16 %v1427, %v1425
        %v1454 = vpack.c.b16 %v1430, %v1428
        %v1455 = vpack.c.b16 %v1431, %v1429
        %v1456 = vpack.c.b16 %v1434, %v1432
        %v1457 = vpack.c.b16 %v1435, %v1433
        %v1458 = vpack.c.b16 %v1438, %v1436
        %v1459 = vpack.c.b16 %v1439, %v1437
        %v1460 = vpack.c.b16 %v1442, %v1440
        %v1461 = vpack.c.b16 %v1443, %v1441
        %v1462 = vpack.c.b16 %v1446, %v1444
        %v1463 = vpack.c.b16 %v1447, %v1445
        %1480 = vmatprep.subr.bf16.mxu0 %v1463
        %1481 = vmatpush1.bf16.msra.mxu0 %v1462
        %1482 = vmatprep.subr.bf16.mxu0 %v1461
        %1483 = vmatpush1.bf16.msra.mxu0 %v1460
        %1484 = vmatprep.subr.bf16.mxu0 %v1459
        %1485 = vmatpush1.bf16.msra.mxu0 %v1458
        %1486 = vmatprep.subr.bf16.mxu0 %v1457
        %1487 = vmatpush1.bf16.msra.mxu0 %v1456
        %1488 = vmatprep.subr.bf16.mxu0 %v1455
        %1489 = vmatpush1.bf16.msra.mxu0 %v1454
        %1490 = vmatprep.subr.bf16.mxu0 %v1453
        %1491 = vmatpush1.bf16.msra.mxu0 %v1452
        %1492 = vmatprep.subr.bf16.mxu0 %v1451
        %1493 = vmatpush1.bf16.msra.mxu0 %v1450
        %1494 = vmatprep.subr.bf16.mxu0 %v1449
        %1495 = vmatpush1.bf16.msra.mxu0 %v1448
        %1496 = vmatprep.subr.bf16.mxu0 0
        %1497 = vmatpush2.bf16.msra.mxu0 0
        %1498 = vmatprep.subr.bf16.mxu0 0
        %1499 = vmatpush2.bf16.msra.mxu0 0
        %1500 = vmatprep.subr.bf16.mxu0 0
        %1501 = vmatpush2.bf16.msra.mxu0 0
        %1502 = vmatprep.subr.bf16.mxu0 0
        %1503 = vmatpush2.bf16.msra.mxu0 0
        %1504 = vmatprep.subr.bf16.mxu0 0
        %1505 = vmatpush2.bf16.msra.mxu0 0
        %1506 = vmatprep.subr.bf16.mxu0 0
        %1507 = vmatpush2.bf16.msra.mxu0 0
        %1508 = vmatprep.subr.bf16.mxu0 0
        %1509 = vmatpush2.bf16.msra.mxu0 0
        %1510 = vmatprep.subr.bf16.mxu0 0
        %1511 = vmatpush2.bf16.msra.mxu0 0
        %1512 = vmatprep.mubr.bf16.mxu0 0
        %1513 = vmatmul.mubr.bf16.gmra.mxu0 %v1398
        %v1514 = vpop.f32.mrf.mxu0
        %v1515 = vadd.f32 0.0, %v1514
        %v1516 = vpop.f32.mrf.mxu0
        %v1517 = vadd.f32 0.0, %v1516
        %v1518 = vpop.f32.mrf.mxu0
        %v1519 = vadd.f32 0.0, %v1518
        %v1520 = vpop.f32.mrf.mxu0
        %v1521 = vadd.f32 0.0, %v1520
        %1522 = vdwg.mxu0
        %v1523 = vadd.f32 %v1375, %v1515
        %v1524 = vadd.f32 %v1376, %v1517
        %v1525 = vadd.f32 %v1377, %v1519
        %v1526 = vadd.f32 %v1378, %v1521
        %s1527 = scalar_lea.vmem [#allocation5], 512
        %v1528 = vld [vmem:[%s1527] sm:$0xff]
        %v1529 = vld [vmem:[%s1527 + $0x8] sm:$0xff]
        %v1530 = vld [vmem:[%s1527 + $0x10] sm:$0xff]
        %v1531 = vld [vmem:[%s1527 + $0x18] sm:$0xff]
        %v1532 = vld [vmem:[%s1527 + $0x20] sm:$0xff]
        %v1533 = vld [vmem:[%s1527 + $0x28] sm:$0xff]
        %v1534 = vld [vmem:[%s1527 + $0x30] sm:$0xff]
        %v1535 = vld [vmem:[%s1527 + $0x38] sm:$0xff]
        %v1536 = vld [vmem:[%s1527 + $0x40] sm:$0xff]
        %v1537 = vld [vmem:[%s1527 + $0x48] sm:$0xff]
        %v1538 = vld [vmem:[%s1527 + $0x50] sm:$0xff]
        %v1539 = vld [vmem:[%s1527 + $0x58] sm:$0xff]
        %v1540 = vld [vmem:[%s1527 + $0x60] sm:$0xff]
        %v1541 = vld [vmem:[%s1527 + $0x68] sm:$0xff]
        %v1542 = vld [vmem:[%s1527 + $0x70] sm:$0xff]
        %v1543 = vld [vmem:[%s1527 + $0x78] sm:$0xff]
        %v1544 = vrot.slane %v944, 2
        %v1562 = vunpack.c.l.b16 %v1528
        %v1563 = vunpack.c.h.b16 %v1528
        %v1564 = vunpack.c.l.b16 %v1529
        %v1565 = vunpack.c.h.b16 %v1529
        %v1566 = vunpack.c.l.b16 %v1530
        %v1567 = vunpack.c.h.b16 %v1530
        %v1568 = vunpack.c.l.b16 %v1531
        %v1569 = vunpack.c.h.b16 %v1531
        %v1570 = vunpack.c.l.b16 %v1532
        %v1571 = vunpack.c.h.b16 %v1532
        %v1572 = vunpack.c.l.b16 %v1533
        %v1573 = vunpack.c.h.b16 %v1533
        %v1574 = vunpack.c.l.b16 %v1534
        %v1575 = vunpack.c.h.b16 %v1534
        %v1576 = vunpack.c.l.b16 %v1535
        %v1577 = vunpack.c.h.b16 %v1535
        %v1578 = vunpack.c.l.b16 %v1536
        %v1579 = vunpack.c.h.b16 %v1536
        %v1580 = vunpack.c.l.b16 %v1537
        %v1581 = vunpack.c.h.b16 %v1537
        %v1582 = vunpack.c.l.b16 %v1538
        %v1583 = vunpack.c.h.b16 %v1538
        %v1584 = vunpack.c.l.b16 %v1539
        %v1585 = vunpack.c.h.b16 %v1539
        %v1586 = vunpack.c.l.b16 %v1540
        %v1587 = vunpack.c.h.b16 %v1540
        %v1588 = vunpack.c.l.b16 %v1541
        %v1589 = vunpack.c.h.b16 %v1541
        %v1590 = vunpack.c.l.b16 %v1542
        %v1591 = vunpack.c.h.b16 %v1542
        %v1592 = vunpack.c.l.b16 %v1543
        %v1593 = vunpack.c.h.b16 %v1543
        %v1594 = vpack.c.b16 %v1564, %v1562
        %v1595 = vpack.c.b16 %v1565, %v1563
        %v1596 = vpack.c.b16 %v1568, %v1566
        %v1597 = vpack.c.b16 %v1569, %v1567
        %v1598 = vpack.c.b16 %v1572, %v1570
        %v1599 = vpack.c.b16 %v1573, %v1571
        %v1600 = vpack.c.b16 %v1576, %v1574
        %v1601 = vpack.c.b16 %v1577, %v1575
        %v1602 = vpack.c.b16 %v1580, %v1578
        %v1603 = vpack.c.b16 %v1581, %v1579
        %v1604 = vpack.c.b16 %v1584, %v1582
        %v1605 = vpack.c.b16 %v1585, %v1583
        %v1606 = vpack.c.b16 %v1588, %v1586
        %v1607 = vpack.c.b16 %v1589, %v1587
        %v1608 = vpack.c.b16 %v1592, %v1590
        %v1609 = vpack.c.b16 %v1593, %v1591
        %1626 = vmatprep.subr.bf16.mxu0 %v1609
        %1627 = vmatpush1.bf16.msra.mxu0 %v1608
        %1628 = vmatprep.subr.bf16.mxu0 %v1607
        %1629 = vmatpush1.bf16.msra.mxu0 %v1606
        %1630 = vmatprep.subr.bf16.mxu0 %v1605
        %1631 = vmatpush1.bf16.msra.mxu0 %v1604
        %1632 = vmatprep.subr.bf16.mxu0 %v1603
        %1633 = vmatpush1.bf16.msra.mxu0 %v1602
        %1634 = vmatprep.subr.bf16.mxu0 %v1601
        %1635 = vmatpush1.bf16.msra.mxu0 %v1600
        %1636 = vmatprep.subr.bf16.mxu0 %v1599
        %1637 = vmatpush1.bf16.msra.mxu0 %v1598
        %1638 = vmatprep.subr.bf16.mxu0 %v1597
        %1639 = vmatpush1.bf16.msra.mxu0 %v1596
        %1640 = vmatprep.subr.bf16.mxu0 %v1595
        %1641 = vmatpush1.bf16.msra.mxu0 %v1594
        %1642 = vmatprep.subr.bf16.mxu0 0
        %1643 = vmatpush2.bf16.msra.mxu0 0
        %1644 = vmatprep.subr.bf16.mxu0 0
        %1645 = vmatpush2.bf16.msra.mxu0 0
        %1646 = vmatprep.subr.bf16.mxu0 0
        %1647 = vmatpush2.bf16.msra.mxu0 0
        %1648 = vmatprep.subr.bf16.mxu0 0
        %1649 = vmatpush2.bf16.msra.mxu0 0
        %1650 = vmatprep.subr.bf16.mxu0 0
        %1651 = vmatpush2.bf16.msra.mxu0 0
        %1652 = vmatprep.subr.bf16.mxu0 0
        %1653 = vmatpush2.bf16.msra.mxu0 0
        %1654 = vmatprep.subr.bf16.mxu0 0
        %1655 = vmatpush2.bf16.msra.mxu0 0
        %1656 = vmatprep.subr.bf16.mxu0 0
        %1657 = vmatpush2.bf16.msra.mxu0 0
        %1658 = vmatprep.mubr.bf16.mxu0 0
        %1659 = vmatmul.mubr.bf16.gmra.mxu0 %v1544
        %v1660 = vpop.f32.mrf.mxu0
        %v1661 = vadd.f32 0.0, %v1660
        %v1662 = vpop.f32.mrf.mxu0
        %v1663 = vadd.f32 0.0, %v1662
        %v1664 = vpop.f32.mrf.mxu0
        %v1665 = vadd.f32 0.0, %v1664
        %v1666 = vpop.f32.mrf.mxu0
        %v1667 = vadd.f32 0.0, %v1666
        %1668 = vdwg.mxu0
        %v1669 = vadd.f32 %v1523, %v1661
        %v1670 = vadd.f32 %v1524, %v1663
        %v1671 = vadd.f32 %v1525, %v1665
        %v1672 = vadd.f32 %v1526, %v1667
        %v1673 = vmax.f32 %v1669, %v1670
        %v1674 = vmax.f32 %v1671, %v1672
        %v1676 = vlaneseq
        %v1677 = vshrl.u32 %v1676, 7
        %v1678 = vsub.s32 0, %v1677
        %v1679 = vrot.slane %v430, %v1678
        %v1681 = vadd.f32 %v1673, %v1679
        %v1682 = vadd.f32 %v1674, %v1679
        %v1683 = vmax.f32 %v1681, 0.0
        %v1684 = vmax.f32 %v1682, 0.0
        %1685 = vst [vmem:[#allocation3] sm:$0xff] %v1683
        %1686 = vst [vmem:[#allocation3 + $0x8] sm:$0x3] %v1684
        %v1687 = vld [vmem:[#allocation3] ss:$2 sm:$0x1f]
        %s1688 = scalar_lea.vmem [#allocation3], 1
        %v1689 = vld [vmem:[%s1688] ss:$2 sm:$0x1f]
        %v1690 = vmax.f32 %v1687, %v1689
        %1691 = vst [vmem:[#allocation4] sm:$0x1] %v1690
        %1692 = vst [vmem:[#allocation4] sm:$0x2] %v1690
        %1693 = vst [vmem:[#allocation4] sm:$0x4] %v1690
        %1694 = vst [vmem:[#allocation4] sm:$0x8] %v1690
        %1695 = vst [vmem:[#allocation4] sm:$0x10] %v1690
        %v1696 = vld [vmem:[#allocation4] sm:$0x1]
        %v1697 = vpack.c.bf16 %v1696, %v1696
        %v1698 = vld [vmem:[#allocation8] sm:$0xf]
        %v1699 = vld [vmem:[#allocation8 + $0x4] sm:$0xf]
        %v1700 = vld [vmem:[#allocation8 + $0x8] sm:$0xf]
        %v1701 = vld [vmem:[#allocation8 + $0xc] sm:$0xf]
        %v1702 = vld [vmem:[#allocation8 + $0x10] sm:$0xf]
        %v1703 = vld [vmem:[#allocation8 + $0x14] sm:$0xf]
        %v1704 = vld [vmem:[#allocation8 + $0x18] sm:$0xf]
        %v1705 = vld [vmem:[#allocation8 + $0x1c] sm:$0xf]
        %v1706 = vld [vmem:[#allocation8 + $0x20] sm:$0xf]
        %v1707 = vld [vmem:[#allocation8 + $0x24] sm:$0xf]
        %v1708 = vld [vmem:[#allocation8 + $0x28] sm:$0xf]
        %v1709 = vld [vmem:[#allocation8 + $0x2c] sm:$0xf]
        %v1710 = vld [vmem:[#allocation8 + $0x30] sm:$0xf]
        %v1711 = vld [vmem:[#allocation8 + $0x34] sm:$0xf]
        %v1712 = vld [vmem:[#allocation8 + $0x38] sm:$0xf]
        %v1713 = vld [vmem:[#allocation8 + $0x3c] sm:$0xf]
        %v1714 = vld [vmem:[#allocation4 + $0x1] sm:$0x1]
        %v1715 = vpack.c.bf16 %v1714, %v1714
        %s1716 = scalar_lea.vmem [#allocation8], 64
        %v1717 = vld [vmem:[%s1716] sm:$0xf]
        %v1718 = vld [vmem:[%s1716 + $0x4] sm:$0xf]
        %v1719 = vld [vmem:[%s1716 + $0x8] sm:$0xf]
        %v1720 = vld [vmem:[%s1716 + $0xc] sm:$0xf]
        %v1721 = vld [vmem:[%s1716 + $0x10] sm:$0xf]
        %v1722 = vld [vmem:[%s1716 + $0x14] sm:$0xf]
        %v1723 = vld [vmem:[%s1716 + $0x18] sm:$0xf]
        %v1724 = vld [vmem:[%s1716 + $0x1c] sm:$0xf]
        %v1725 = vld [vmem:[%s1716 + $0x20] sm:$0xf]
        %v1726 = vld [vmem:[%s1716 + $0x24] sm:$0xf]
        %v1727 = vld [vmem:[%s1716 + $0x28] sm:$0xf]
        %v1728 = vld [vmem:[%s1716 + $0x2c] sm:$0xf]
        %v1729 = vld [vmem:[%s1716 + $0x30] sm:$0xf]
        %v1730 = vld [vmem:[%s1716 + $0x34] sm:$0xf]
        %v1731 = vld [vmem:[%s1716 + $0x38] sm:$0xf]
        %v1732 = vld [vmem:[%s1716 + $0x3c] sm:$0xf]
        %v1749 = vunpack.c.l.b16 %v1717
        %v1750 = vunpack.c.l.b16 %v1718
        %v1751 = vunpack.c.l.b16 %v1719
        %v1752 = vunpack.c.l.b16 %v1720
        %v1753 = vunpack.c.l.b16 %v1721
        %v1754 = vunpack.c.l.b16 %v1722
        %v1755 = vunpack.c.l.b16 %v1723
        %v1756 = vunpack.c.l.b16 %v1724
        %v1757 = vunpack.c.l.b16 %v1725
        %v1758 = vunpack.c.l.b16 %v1726
        %v1759 = vunpack.c.l.b16 %v1727
        %v1760 = vunpack.c.l.b16 %v1728
        %v1761 = vunpack.c.l.b16 %v1729
        %v1762 = vunpack.c.l.b16 %v1730
        %v1763 = vunpack.c.l.b16 %v1731
        %v1764 = vunpack.c.l.b16 %v1732
        %v1765 = vpack.c.b16 %v1750, %v1749
        %v1766 = vpack.c.b16 %v1752, %v1751
        %v1767 = vpack.c.b16 %v1754, %v1753
        %v1768 = vpack.c.b16 %v1756, %v1755
        %v1769 = vpack.c.b16 %v1758, %v1757
        %v1770 = vpack.c.b16 %v1760, %v1759
        %v1771 = vpack.c.b16 %v1762, %v1761
        %v1772 = vpack.c.b16 %v1764, %v1763
        %1781 = vmatprep.subr.bf16.mxu0 0
        %1782 = vmatpush1.bf16.msra.mxu0 %v1772
        %1783 = vmatprep.subr.bf16.mxu0 0
        %1784 = vmatpush1.bf16.msra.mxu0 %v1771
        %1785 = vmatprep.subr.bf16.mxu0 0
        %1786 = vmatpush1.bf16.msra.mxu0 %v1770
        %1787 = vmatprep.subr.bf16.mxu0 0
        %1788 = vmatpush1.bf16.msra.mxu0 %v1769
        %1789 = vmatprep.subr.bf16.mxu0 0
        %1790 = vmatpush1.bf16.msra.mxu0 %v1768
        %1791 = vmatprep.subr.bf16.mxu0 0
        %1792 = vmatpush1.bf16.msra.mxu0 %v1767
        %1793 = vmatprep.subr.bf16.mxu0 0
        %1794 = vmatpush1.bf16.msra.mxu0 %v1766
        %1795 = vmatprep.subr.bf16.mxu0 0
        %1796 = vmatpush1.bf16.msra.mxu0 %v1765
        %1797 = vmatprep.subr.bf16.mxu0 0
        %1798 = vmatpush2.bf16.msra.mxu0 0
        %1799 = vmatprep.subr.bf16.mxu0 0
        %1800 = vmatpush2.bf16.msra.mxu0 0
        %1801 = vmatprep.subr.bf16.mxu0 0
        %1802 = vmatpush2.bf16.msra.mxu0 0
        %1803 = vmatprep.subr.bf16.mxu0 0
        %1804 = vmatpush2.bf16.msra.mxu0 0
        %1805 = vmatprep.subr.bf16.mxu0 0
        %1806 = vmatpush2.bf16.msra.mxu0 0
        %1807 = vmatprep.subr.bf16.mxu0 0
        %1808 = vmatpush2.bf16.msra.mxu0 0
        %1809 = vmatprep.subr.bf16.mxu0 0
        %1810 = vmatpush2.bf16.msra.mxu0 0
        %1811 = vmatprep.subr.bf16.mxu0 0
        %1812 = vmatpush2.bf16.msra.mxu0 0
        %1813 = vmatprep.mubr.bf16.mxu0 0
        %1814 = vmatmul.mubr.bf16.gmra.mxu0 %v1715
        %v1815 = vpop.f32.mrf.mxu0
        %v1816 = vadd.f32 0.0, %v1815
        %v1817 = vpop.f32.mrf.mxu0
        %v1818 = vpop.f32.mrf.mxu0
        %v1819 = vpop.f32.mrf.mxu0
        %1820 = vdwg.mxu0
        %v1837 = vunpack.c.l.b16 %v1698
        %v1838 = vunpack.c.l.b16 %v1699
        %v1839 = vunpack.c.l.b16 %v1700
        %v1840 = vunpack.c.l.b16 %v1701
        %v1841 = vunpack.c.l.b16 %v1702
        %v1842 = vunpack.c.l.b16 %v1703
        %v1843 = vunpack.c.l.b16 %v1704
        %v1844 = vunpack.c.l.b16 %v1705
        %v1845 = vunpack.c.l.b16 %v1706
        %v1846 = vunpack.c.l.b16 %v1707
        %v1847 = vunpack.c.l.b16 %v1708
        %v1848 = vunpack.c.l.b16 %v1709
        %v1849 = vunpack.c.l.b16 %v1710
        %v1850 = vunpack.c.l.b16 %v1711
        %v1851 = vunpack.c.l.b16 %v1712
        %v1852 = vunpack.c.l.b16 %v1713
        %v1853 = vpack.c.b16 %v1838, %v1837
        %v1854 = vpack.c.b16 %v1840, %v1839
        %v1855 = vpack.c.b16 %v1842, %v1841
        %v1856 = vpack.c.b16 %v1844, %v1843
        %v1857 = vpack.c.b16 %v1846, %v1845
        %v1858 = vpack.c.b16 %v1848, %v1847
        %v1859 = vpack.c.b16 %v1850, %v1849
        %v1860 = vpack.c.b16 %v1852, %v1851
        %1869 = vmatprep.subr.bf16.mxu0 0
        %1870 = vmatpush1.bf16.msra.mxu0 %v1860
        %1871 = vmatprep.subr.bf16.mxu0 0
        %1872 = vmatpush1.bf16.msra.mxu0 %v1859
        %1873 = vmatprep.subr.bf16.mxu0 0
        %1874 = vmatpush1.bf16.msra.mxu0 %v1858
        %1875 = vmatprep.subr.bf16.mxu0 0
        %1876 = vmatpush1.bf16.msra.mxu0 %v1857
        %1877 = vmatprep.subr.bf16.mxu0 0
        %1878 = vmatpush1.bf16.msra.mxu0 %v1856
        %1879 = vmatprep.subr.bf16.mxu0 0
        %1880 = vmatpush1.bf16.msra.mxu0 %v1855
        %1881 = vmatprep.subr.bf16.mxu0 0
        %1882 = vmatpush1.bf16.msra.mxu0 %v1854
        %1883 = vmatprep.subr.bf16.mxu0 0
        %1884 = vmatpush1.bf16.msra.mxu0 %v1853
        %1885 = vmatprep.subr.bf16.mxu0 0
        %1886 = vmatpush2.bf16.msra.mxu0 0
        %1887 = vmatprep.subr.bf16.mxu0 0
        %1888 = vmatpush2.bf16.msra.mxu0 0
        %1889 = vmatprep.subr.bf16.mxu0 0
        %1890 = vmatpush2.bf16.msra.mxu0 0
        %1891 = vmatprep.subr.bf16.mxu0 0
        %1892 = vmatpush2.bf16.msra.mxu0 0
        %1893 = vmatprep.subr.bf16.mxu0 0
        %1894 = vmatpush2.bf16.msra.mxu0 0
        %1895 = vmatprep.subr.bf16.mxu0 0
        %1896 = vmatpush2.bf16.msra.mxu0 0
        %1897 = vmatprep.subr.bf16.mxu0 0
        %1898 = vmatpush2.bf16.msra.mxu0 0
        %1899 = vmatprep.subr.bf16.mxu0 0
        %1900 = vmatpush2.bf16.msra.mxu0 0
        %1901 = vmatprep.mubr.bf16.mxu0 0
        %1902 = vmatmul.mubr.bf16.gmra.mxu0 %v1697
        %v1903 = vpop.f32.mrf.mxu0
        %v1904 = vadd.f32 %v1816, %v1903
        %v1905 = vpop.f32.mrf.mxu0
        %v1906 = vpop.f32.mrf.mxu0
        %v1907 = vpop.f32.mrf.mxu0
        %1908 = vdwg.mxu0
        %v1909 = vld [vmem:[#allocation4 + $0x2] sm:$0x1]
        %v1910 = vpack.c.bf16 %v1909, %v1909
        %s1911 = scalar_lea.vmem [#allocation8], 128
        %v1912 = vld [vmem:[%s1911] sm:$0xf]
        %v1913 = vld [vmem:[%s1911 + $0x4] sm:$0xf]
        %v1914 = vld [vmem:[%s1911 + $0x8] sm:$0xf]
        %v1915 = vld [vmem:[%s1911 + $0xc] sm:$0xf]
        %v1916 = vld [vmem:[%s1911 + $0x10] sm:$0xf]
        %v1917 = vld [vmem:[%s1911 + $0x14] sm:$0xf]
        %v1918 = vld [vmem:[%s1911 + $0x18] sm:$0xf]
        %v1919 = vld [vmem:[%s1911 + $0x1c] sm:$0xf]
        %v1920 = vld [vmem:[%s1911 + $0x20] sm:$0xf]
        %v1921 = vld [vmem:[%s1911 + $0x24] sm:$0xf]
        %v1922 = vld [vmem:[%s1911 + $0x28] sm:$0xf]
        %v1923 = vld [vmem:[%s1911 + $0x2c] sm:$0xf]
        %v1924 = vld [vmem:[%s1911 + $0x30] sm:$0xf]
        %v1925 = vld [vmem:[%s1911 + $0x34] sm:$0xf]
        %v1926 = vld [vmem:[%s1911 + $0x38] sm:$0xf]
        %v1927 = vld [vmem:[%s1911 + $0x3c] sm:$0xf]
        %v1944 = vunpack.c.l.b16 %v1912
        %v1945 = vunpack.c.l.b16 %v1913
        %v1946 = vunpack.c.l.b16 %v1914
        %v1947 = vunpack.c.l.b16 %v1915
        %v1948 = vunpack.c.l.b16 %v1916
        %v1949 = vunpack.c.l.b16 %v1917
        %v1950 = vunpack.c.l.b16 %v1918
        %v1951 = vunpack.c.l.b16 %v1919
        %v1952 = vunpack.c.l.b16 %v1920
        %v1953 = vunpack.c.l.b16 %v1921
        %v1954 = vunpack.c.l.b16 %v1922
        %v1955 = vunpack.c.l.b16 %v1923
        %v1956 = vunpack.c.l.b16 %v1924
        %v1957 = vunpack.c.l.b16 %v1925
        %v1958 = vunpack.c.l.b16 %v1926
        %v1959 = vunpack.c.l.b16 %v1927
        %v1960 = vpack.c.b16 %v1945, %v1944
        %v1961 = vpack.c.b16 %v1947, %v1946
        %v1962 = vpack.c.b16 %v1949, %v1948
        %v1963 = vpack.c.b16 %v1951, %v1950
        %v1964 = vpack.c.b16 %v1953, %v1952
        %v1965 = vpack.c.b16 %v1955, %v1954
        %v1966 = vpack.c.b16 %v1957, %v1956
        %v1967 = vpack.c.b16 %v1959, %v1958
        %1976 = vmatprep.subr.bf16.mxu0 0
        %1977 = vmatpush1.bf16.msra.mxu0 %v1967
        %1978 = vmatprep.subr.bf16.mxu0 0
        %1979 = vmatpush1.bf16.msra.mxu0 %v1966
        %1980 = vmatprep.subr.bf16.mxu0 0
        %1981 = vmatpush1.bf16.msra.mxu0 %v1965
        %1982 = vmatprep.subr.bf16.mxu0 0
        %1983 = vmatpush1.bf16.msra.mxu0 %v1964
        %1984 = vmatprep.subr.bf16.mxu0 0
        %1985 = vmatpush1.bf16.msra.mxu0 %v1963
        %1986 = vmatprep.subr.bf16.mxu0 0
        %1987 = vmatpush1.bf16.msra.mxu0 %v1962
        %1988 = vmatprep.subr.bf16.mxu0 0
        %1989 = vmatpush1.bf16.msra.mxu0 %v1961
        %1990 = vmatprep.subr.bf16.mxu0 0
        %1991 = vmatpush1.bf16.msra.mxu0 %v1960
        %1992 = vmatprep.subr.bf16.mxu0 0
        %1993 = vmatpush2.bf16.msra.mxu0 0
        %1994 = vmatprep.subr.bf16.mxu0 0
        %1995 = vmatpush2.bf16.msra.mxu0 0
        %1996 = vmatprep.subr.bf16.mxu0 0
        %1997 = vmatpush2.bf16.msra.mxu0 0
        %1998 = vmatprep.subr.bf16.mxu0 0
        %1999 = vmatpush2.bf16.msra.mxu0 0
        %2000 = vmatprep.subr.bf16.mxu0 0
        %2001 = vmatpush2.bf16.msra.mxu0 0
        %2002 = vmatprep.subr.bf16.mxu0 0
        %2003 = vmatpush2.bf16.msra.mxu0 0
        %2004 = vmatprep.subr.bf16.mxu0 0
        %2005 = vmatpush2.bf16.msra.mxu0 0
        %2006 = vmatprep.subr.bf16.mxu0 0
        %2007 = vmatpush2.bf16.msra.mxu0 0
        %2008 = vmatprep.mubr.bf16.mxu0 0
        %2009 = vmatmul.mubr.bf16.gmra.mxu0 %v1910
        %v2010 = vpop.f32.mrf.mxu0
        %v2011 = vadd.f32 0.0, %v2010
        %v2012 = vpop.f32.mrf.mxu0
        %v2013 = vpop.f32.mrf.mxu0
        %v2014 = vpop.f32.mrf.mxu0
        %2015 = vdwg.mxu0
        %v2016 = vadd.f32 %v1904, %v2011
        %v2017 = vld [vmem:[#allocation4 + $0x3] sm:$0x1]
        %v2018 = vpack.c.bf16 %v2017, %v2017
        %s2019 = scalar_lea.vmem [#allocation8], 192
        %v2020 = vld [vmem:[%s2019] sm:$0xf]
        %v2021 = vld [vmem:[%s2019 + $0x4] sm:$0xf]
        %v2022 = vld [vmem:[%s2019 + $0x8] sm:$0xf]
        %v2023 = vld [vmem:[%s2019 + $0xc] sm:$0xf]
        %v2024 = vld [vmem:[%s2019 + $0x10] sm:$0xf]
        %v2025 = vld [vmem:[%s2019 + $0x14] sm:$0xf]
        %v2026 = vld [vmem:[%s2019 + $0x18] sm:$0xf]
        %v2027 = vld [vmem:[%s2019 + $0x1c] sm:$0xf]
        %v2028 = vld [vmem:[%s2019 + $0x20] sm:$0xf]
        %v2029 = vld [vmem:[%s2019 + $0x24] sm:$0xf]
        %v2030 = vld [vmem:[%s2019 + $0x28] sm:$0xf]
        %v2031 = vld [vmem:[%s2019 + $0x2c] sm:$0xf]
        %v2032 = vld [vmem:[%s2019 + $0x30] sm:$0xf]
        %v2033 = vld [vmem:[%s2019 + $0x34] sm:$0xf]
        %v2034 = vld [vmem:[%s2019 + $0x38] sm:$0xf]
        %v2035 = vld [vmem:[%s2019 + $0x3c] sm:$0xf]
        %v2052 = vunpack.c.l.b16 %v2020
        %v2053 = vunpack.c.l.b16 %v2021
        %v2054 = vunpack.c.l.b16 %v2022
        %v2055 = vunpack.c.l.b16 %v2023
        %v2056 = vunpack.c.l.b16 %v2024
        %v2057 = vunpack.c.l.b16 %v2025
        %v2058 = vunpack.c.l.b16 %v2026
        %v2059 = vunpack.c.l.b16 %v2027
        %v2060 = vunpack.c.l.b16 %v2028
        %v2061 = vunpack.c.l.b16 %v2029
        %v2062 = vunpack.c.l.b16 %v2030
        %v2063 = vunpack.c.l.b16 %v2031
        %v2064 = vunpack.c.l.b16 %v2032
        %v2065 = vunpack.c.l.b16 %v2033
        %v2066 = vunpack.c.l.b16 %v2034
        %v2067 = vunpack.c.l.b16 %v2035
        %v2068 = vpack.c.b16 %v2053, %v2052
        %v2069 = vpack.c.b16 %v2055, %v2054
        %v2070 = vpack.c.b16 %v2057, %v2056
        %v2071 = vpack.c.b16 %v2059, %v2058
        %v2072 = vpack.c.b16 %v2061, %v2060
        %v2073 = vpack.c.b16 %v2063, %v2062
        %v2074 = vpack.c.b16 %v2065, %v2064
        %v2075 = vpack.c.b16 %v2067, %v2066
        %2084 = vmatprep.subr.bf16.mxu0 0
        %2085 = vmatpush1.bf16.msra.mxu0 %v2075
        %2086 = vmatprep.subr.bf16.mxu0 0
        %2087 = vmatpush1.bf16.msra.mxu0 %v2074
        %2088 = vmatprep.subr.bf16.mxu0 0
        %2089 = vmatpush1.bf16.msra.mxu0 %v2073
        %2090 = vmatprep.subr.bf16.mxu0 0
        %2091 = vmatpush1.bf16.msra.mxu0 %v2072
        %2092 = vmatprep.subr.bf16.mxu0 0
        %2093 = vmatpush1.bf16.msra.mxu0 %v2071
        %2094 = vmatprep.subr.bf16.mxu0 0
        %2095 = vmatpush1.bf16.msra.mxu0 %v2070
        %2096 = vmatprep.subr.bf16.mxu0 0
        %2097 = vmatpush1.bf16.msra.mxu0 %v2069
        %2098 = vmatprep.subr.bf16.mxu0 0
        %2099 = vmatpush1.bf16.msra.mxu0 %v2068
        %2100 = vmatprep.subr.bf16.mxu0 0
        %2101 = vmatpush2.bf16.msra.mxu0 0
        %2102 = vmatprep.subr.bf16.mxu0 0
        %2103 = vmatpush2.bf16.msra.mxu0 0
        %2104 = vmatprep.subr.bf16.mxu0 0
        %2105 = vmatpush2.bf16.msra.mxu0 0
        %2106 = vmatprep.subr.bf16.mxu0 0
        %2107 = vmatpush2.bf16.msra.mxu0 0
        %2108 = vmatprep.subr.bf16.mxu0 0
        %2109 = vmatpush2.bf16.msra.mxu0 0
        %2110 = vmatprep.subr.bf16.mxu0 0
        %2111 = vmatpush2.bf16.msra.mxu0 0
        %2112 = vmatprep.subr.bf16.mxu0 0
        %2113 = vmatpush2.bf16.msra.mxu0 0
        %2114 = vmatprep.subr.bf16.mxu0 0
        %2115 = vmatpush2.bf16.msra.mxu0 0
        %2116 = vmatprep.mubr.bf16.mxu0 0
        %2117 = vmatmul.mubr.bf16.gmra.mxu0 %v2018
        %v2118 = vpop.f32.mrf.mxu0
        %v2119 = vadd.f32 0.0, %v2118
        %v2120 = vpop.f32.mrf.mxu0
        %v2121 = vpop.f32.mrf.mxu0
        %v2122 = vpop.f32.mrf.mxu0
        %2123 = vdwg.mxu0
        %v2124 = vadd.f32 %v2016, %v2119
        %v2125 = vld [vmem:[#allocation4 + $0x4] sm:$0x1]
        %v2126 = vpack.c.bf16 %v2125, %v2125
        %s2127 = scalar_lea.vmem [#allocation8], 256
        %v2128 = vld [vmem:[%s2127] sm:$0xf]
        %v2129 = vld [vmem:[%s2127 + $0x4] sm:$0xf]
        %v2130 = vld [vmem:[%s2127 + $0x8] sm:$0xf]
        %v2131 = vld [vmem:[%s2127 + $0xc] sm:$0xf]
        %v2132 = vld [vmem:[%s2127 + $0x10] sm:$0xf]
        %v2133 = vld [vmem:[%s2127 + $0x14] sm:$0xf]
        %v2134 = vld [vmem:[%s2127 + $0x18] sm:$0xf]
        %v2135 = vld [vmem:[%s2127 + $0x1c] sm:$0xf]
        %v2136 = vld [vmem:[%s2127 + $0x20] sm:$0xf]
        %v2137 = vld [vmem:[%s2127 + $0x24] sm:$0xf]
        %v2138 = vld [vmem:[%s2127 + $0x28] sm:$0xf]
        %v2139 = vld [vmem:[%s2127 + $0x2c] sm:$0xf]
        %v2140 = vld [vmem:[%s2127 + $0x30] sm:$0xf]
        %v2141 = vld [vmem:[%s2127 + $0x34] sm:$0xf]
        %v2142 = vld [vmem:[%s2127 + $0x38] sm:$0xf]
        %v2143 = vld [vmem:[%s2127 + $0x3c] sm:$0xf]
        %v2160 = vunpack.c.l.b16 %v2128
        %v2161 = vunpack.c.l.b16 %v2129
        %v2162 = vunpack.c.l.b16 %v2130
        %v2163 = vunpack.c.l.b16 %v2131
        %v2164 = vunpack.c.l.b16 %v2132
        %v2165 = vunpack.c.l.b16 %v2133
        %v2166 = vunpack.c.l.b16 %v2134
        %v2167 = vunpack.c.l.b16 %v2135
        %v2168 = vunpack.c.l.b16 %v2136
        %v2169 = vunpack.c.l.b16 %v2137
        %v2170 = vunpack.c.l.b16 %v2138
        %v2171 = vunpack.c.l.b16 %v2139
        %v2172 = vunpack.c.l.b16 %v2140
        %v2173 = vunpack.c.l.b16 %v2141
        %v2174 = vunpack.c.l.b16 %v2142
        %v2175 = vunpack.c.l.b16 %v2143
        %v2176 = vpack.c.b16 %v2161, %v2160
        %v2177 = vpack.c.b16 %v2163, %v2162
        %v2178 = vpack.c.b16 %v2165, %v2164
        %v2179 = vpack.c.b16 %v2167, %v2166
        %v2180 = vpack.c.b16 %v2169, %v2168
        %v2181 = vpack.c.b16 %v2171, %v2170
        %v2182 = vpack.c.b16 %v2173, %v2172
        %v2183 = vpack.c.b16 %v2175, %v2174
        %2192 = vmatprep.subr.bf16.mxu0 0
        %2193 = vmatpush1.bf16.msra.mxu0 %v2183
        %2194 = vmatprep.subr.bf16.mxu0 0
        %2195 = vmatpush1.bf16.msra.mxu0 %v2182
        %2196 = vmatprep.subr.bf16.mxu0 0
        %2197 = vmatpush1.bf16.msra.mxu0 %v2181
        %2198 = vmatprep.subr.bf16.mxu0 0
        %2199 = vmatpush1.bf16.msra.mxu0 %v2180
        %2200 = vmatprep.subr.bf16.mxu0 0
        %2201 = vmatpush1.bf16.msra.mxu0 %v2179
        %2202 = vmatprep.subr.bf16.mxu0 0
        %2203 = vmatpush1.bf16.msra.mxu0 %v2178
        %2204 = vmatprep.subr.bf16.mxu0 0
        %2205 = vmatpush1.bf16.msra.mxu0 %v2177
        %2206 = vmatprep.subr.bf16.mxu0 0
        %2207 = vmatpush1.bf16.msra.mxu0 %v2176
        %2208 = vmatprep.subr.bf16.mxu0 0
        %2209 = vmatpush2.bf16.msra.mxu0 0
        %2210 = vmatprep.subr.bf16.mxu0 0
        %2211 = vmatpush2.bf16.msra.mxu0 0
        %2212 = vmatprep.subr.bf16.mxu0 0
        %2213 = vmatpush2.bf16.msra.mxu0 0
        %2214 = vmatprep.subr.bf16.mxu0 0
        %2215 = vmatpush2.bf16.msra.mxu0 0
        %2216 = vmatprep.subr.bf16.mxu0 0
        %2217 = vmatpush2.bf16.msra.mxu0 0
        %2218 = vmatprep.subr.bf16.mxu0 0
        %2219 = vmatpush2.bf16.msra.mxu0 0
        %2220 = vmatprep.subr.bf16.mxu0 0
        %2221 = vmatpush2.bf16.msra.mxu0 0
        %2222 = vmatprep.subr.bf16.mxu0 0
        %2223 = vmatpush2.bf16.msra.mxu0 0
        %2224 = vmatprep.mubr.bf16.mxu0 0
        %2225 = vmatmul.mubr.bf16.gmra.mxu0 %v2126
        %v2226 = vpop.f32.mrf.mxu0
        %v2227 = vadd.f32 0.0, %v2226
        %v2228 = vpop.f32.mrf.mxu0
        %v2229 = vpop.f32.mrf.mxu0
        %v2230 = vpop.f32.mrf.mxu0
        %2231 = vdwg.mxu0
        %v2232 = vadd.f32 %v2124, %v2227
        %v2233 = vld [vmem:[%s6] sm:$0x1]
        %v2234 = vadd.f32 %v2232, %v2233
        %v2235 = vmax.f32 %v2234, 0.0
        %v2236 = vpack.c.bf16 %v2235, %v2235
        %v2237 = vld [vmem:[%s7] sm:$0xf]
        %v2238 = vld [vmem:[%s7 + $0x4] sm:$0xf]
        %v2239 = vld [vmem:[%s7 + $0x8] sm:$0xf]
        %v2240 = vld [vmem:[%s7 + $0xc] sm:$0xf]
        %v2241 = vld [vmem:[%s7 + $0x10] sm:$0xf]
        %v2242 = vld [vmem:[%s7 + $0x14] sm:$0xf]
        %v2243 = vld [vmem:[%s7 + $0x18] sm:$0xf]
        %v2244 = vld [vmem:[%s7 + $0x1c] sm:$0xf]
        %v2245 = vld [vmem:[%s7 + $0x20] sm:$0xf]
        %v2246 = vld [vmem:[%s7 + $0x24] sm:$0xf]
        %v2247 = vld [vmem:[%s7 + $0x28] sm:$0xf]
        %v2248 = vld [vmem:[%s7 + $0x2c] sm:$0xf]
        %v2249 = vld [vmem:[%s7 + $0x30] sm:$0xf]
        %v2250 = vld [vmem:[%s7 + $0x34] sm:$0xf]
        %v2251 = vld [vmem:[%s7 + $0x38] sm:$0xf]
        %v2252 = vld [vmem:[%s7 + $0x3c] sm:$0xf]
        %v2253 = vld [vmem:[%s8] sm:$0x1]
        %v2270 = vunpack.c.l.b16 %v2237
        %v2271 = vunpack.c.l.b16 %v2238
        %v2272 = vunpack.c.l.b16 %v2239
        %v2273 = vunpack.c.l.b16 %v2240
        %v2274 = vunpack.c.l.b16 %v2241
        %v2275 = vunpack.c.l.b16 %v2242
        %v2276 = vunpack.c.l.b16 %v2243
        %v2277 = vunpack.c.l.b16 %v2244
        %v2278 = vunpack.c.l.b16 %v2245
        %v2279 = vunpack.c.l.b16 %v2246
        %v2280 = vunpack.c.l.b16 %v2247
        %v2281 = vunpack.c.l.b16 %v2248
        %v2282 = vunpack.c.l.b16 %v2249
        %v2283 = vunpack.c.l.b16 %v2250
        %v2284 = vunpack.c.l.b16 %v2251
        %v2285 = vunpack.c.l.b16 %v2252
        %v2286 = vpack.c.b16 %v2271, %v2270
        %v2287 = vpack.c.b16 %v2273, %v2272
        %v2288 = vpack.c.b16 %v2275, %v2274
        %v2289 = vpack.c.b16 %v2277, %v2276
        %v2290 = vpack.c.b16 %v2279, %v2278
        %v2291 = vpack.c.b16 %v2281, %v2280
        %v2292 = vpack.c.b16 %v2283, %v2282
        %v2293 = vpack.c.b16 %v2285, %v2284
        %2302 = vmatprep.subr.bf16.mxu0 0
        %2303 = vmatpush1.bf16.msra.mxu0 %v2293
        %2304 = vmatprep.subr.bf16.mxu0 0
        %2305 = vmatpush1.bf16.msra.mxu0 %v2292
        %2306 = vmatprep.subr.bf16.mxu0 0
        %2307 = vmatpush1.bf16.msra.mxu0 %v2291
        %2308 = vmatprep.subr.bf16.mxu0 0
        %2309 = vmatpush1.bf16.msra.mxu0 %v2290
        %2310 = vmatprep.subr.bf16.mxu0 0
        %2311 = vmatpush1.bf16.msra.mxu0 %v2289
        %2312 = vmatprep.subr.bf16.mxu0 0
        %2313 = vmatpush1.bf16.msra.mxu0 %v2288
        %2314 = vmatprep.subr.bf16.mxu0 0
        %2315 = vmatpush1.bf16.msra.mxu0 %v2287
        %2316 = vmatprep.subr.bf16.mxu0 0
        %2317 = vmatpush1.bf16.msra.mxu0 %v2286
        %2318 = vmatprep.subr.bf16.mxu0 0
        %2319 = vmatpush2.bf16.msra.mxu0 0
        %2320 = vmatprep.subr.bf16.mxu0 0
        %2321 = vmatpush2.bf16.msra.mxu0 0
        %2322 = vmatprep.subr.bf16.mxu0 0
        %2323 = vmatpush2.bf16.msra.mxu0 0
        %2324 = vmatprep.subr.bf16.mxu0 0
        %2325 = vmatpush2.bf16.msra.mxu0 0
        %2326 = vmatprep.subr.bf16.mxu0 0
        %2327 = vmatpush2.bf16.msra.mxu0 0
        %2328 = vmatprep.subr.bf16.mxu0 0
        %2329 = vmatpush2.bf16.msra.mxu0 0
        %2330 = vmatprep.subr.bf16.mxu0 0
        %2331 = vmatpush2.bf16.msra.mxu0 0
        %2332 = vmatprep.subr.bf16.mxu0 0
        %2333 = vmatpush2.bf16.msra.mxu0 0
        %2334 = vmatprep.mubr.bf16.mxu0 0
        %2335 = vmatmul.mubr.bf16.gmra.mxu0 %v2236
        %v2336 = vpop.f32.mrf.mxu0
        %v2337 = vadd.f32 %v2253, %v2336
        %v2338 = vpop.f32.mrf.mxu0
        %v2339 = vpop.f32.mrf.mxu0
        %v2340 = vpop.f32.mrf.mxu0
        %2341 = vdwg.mxu0
        %v2342 = vmax.f32 %v2337, 0.0
        %v2343 = vpack.c.bf16 %v2342, %v2342
        %v2344 = vld [vmem:[#allocation10] sm:$0xf]
        %v2345 = vld [vmem:[#allocation10 + $0x4] sm:$0xf]
        %v2346 = vld [vmem:[#allocation10 + $0x8] sm:$0xf]
        %v2347 = vld [vmem:[#allocation10 + $0xc] sm:$0xf]
        %v2348 = vld [vmem:[#allocation10 + $0x10] sm:$0xf]
        %v2349 = vld [vmem:[#allocation10 + $0x14] sm:$0xf]
        %v2350 = vld [vmem:[#allocation10 + $0x18] sm:$0xf]
        %v2351 = vld [vmem:[#allocation10 + $0x1c] sm:$0xf]
        %v2352 = vld [vmem:[#allocation10 + $0x20] sm:$0xf]
        %v2353 = vld [vmem:[#allocation10 + $0x24] sm:$0xf]
        %v2354 = vld [vmem:[#allocation10 + $0x28] sm:$0xf]
        %v2355 = vld [vmem:[#allocation10 + $0x2c] sm:$0xf]
        %v2356 = vld [vmem:[#allocation10 + $0x30] sm:$0xf]
        %v2357 = vld [vmem:[#allocation10 + $0x34] sm:$0xf]
        %v2358 = vld [vmem:[#allocation10 + $0x38] sm:$0xf]
        %v2359 = vld [vmem:[#allocation10 + $0x3c] sm:$0xf]
        %v2360 = vld [vmem:[%s10] sm:$0x1]
        %v2377 = vunpack.c.l.b16 %v2344
        %v2378 = vunpack.c.l.b16 %v2345
        %v2379 = vunpack.c.l.b16 %v2346
        %v2380 = vunpack.c.l.b16 %v2347
        %v2381 = vunpack.c.l.b16 %v2348
        %v2382 = vunpack.c.l.b16 %v2349
        %v2383 = vunpack.c.l.b16 %v2350
        %v2384 = vunpack.c.l.b16 %v2351
        %v2385 = vunpack.c.l.b16 %v2352
        %v2386 = vunpack.c.l.b16 %v2353
        %v2387 = vunpack.c.l.b16 %v2354
        %v2388 = vunpack.c.l.b16 %v2355
        %v2389 = vunpack.c.l.b16 %v2356
        %v2390 = vunpack.c.l.b16 %v2357
        %v2391 = vunpack.c.l.b16 %v2358
        %v2392 = vunpack.c.l.b16 %v2359
        %v2393 = vpack.c.b16 %v2378, %v2377
        %v2394 = vpack.c.b16 %v2380, %v2379
        %v2395 = vpack.c.b16 %v2382, %v2381
        %v2396 = vpack.c.b16 %v2384, %v2383
        %v2397 = vpack.c.b16 %v2386, %v2385
        %v2398 = vpack.c.b16 %v2388, %v2387
        %v2399 = vpack.c.b16 %v2390, %v2389
        %v2400 = vpack.c.b16 %v2392, %v2391
        %2409 = vmatprep.subr.bf16.mxu0 0
        %2410 = vmatpush1.bf16.msra.mxu0 %v2400
        %2411 = vmatprep.subr.bf16.mxu0 0
        %2412 = vmatpush1.bf16.msra.mxu0 %v2399
        %2413 = vmatprep.subr.bf16.mxu0 0
        %2414 = vmatpush1.bf16.msra.mxu0 %v2398
        %2415 = vmatprep.subr.bf16.mxu0 0
        %2416 = vmatpush1.bf16.msra.mxu0 %v2397
        %2417 = vmatprep.subr.bf16.mxu0 0
        %2418 = vmatpush1.bf16.msra.mxu0 %v2396
        %2419 = vmatprep.subr.bf16.mxu0 0
        %2420 = vmatpush1.bf16.msra.mxu0 %v2395
        %2421 = vmatprep.subr.bf16.mxu0 0
        %2422 = vmatpush1.bf16.msra.mxu0 %v2394
        %2423 = vmatprep.subr.bf16.mxu0 0
        %2424 = vmatpush1.bf16.msra.mxu0 %v2393
        %2425 = vmatprep.subr.bf16.mxu0 0
        %2426 = vmatpush2.bf16.msra.mxu0 0
        %2427 = vmatprep.subr.bf16.mxu0 0
        %2428 = vmatpush2.bf16.msra.mxu0 0
        %2429 = vmatprep.subr.bf16.mxu0 0
        %2430 = vmatpush2.bf16.msra.mxu0 0
        %2431 = vmatprep.subr.bf16.mxu0 0
        %2432 = vmatpush2.bf16.msra.mxu0 0
        %2433 = vmatprep.subr.bf16.mxu0 0
        %2434 = vmatpush2.bf16.msra.mxu0 0
        %2435 = vmatprep.subr.bf16.mxu0 0
        %2436 = vmatpush2.bf16.msra.mxu0 0
        %2437 = vmatprep.subr.bf16.mxu0 0
        %2438 = vmatpush2.bf16.msra.mxu0 0
        %2439 = vmatprep.subr.bf16.mxu0 0
        %2440 = vmatpush2.bf16.msra.mxu0 0
        %2441 = vmatprep.mubr.bf16.mxu0 0
        %2442 = vmatmul.mubr.bf16.gmra.mxu0 %v2343
        %v2443 = vpop.f32.mrf.mxu0
        %v2444 = vadd.f32 %v2360, %v2443
        %v2445 = vpop.f32.mrf.mxu0
        %v2446 = vpop.f32.mrf.mxu0
        %v2447 = vpop.f32.mrf.mxu0
        %2448 = vdwg.mxu0
        %2449 = vst [vmem:[%s422] sm:$0x1] %v2444
        %s2450 = sand.u32 %s271, 1
        %s2451 = scalar_lea.sflag [#allocation7], %s2450
        %s2452 = sand.u32 %s271, 1
        %s2453 = scalar_lea.vmem [#allocation11], %s2452
        // Predicated region
        $region77: #{lenet_forward.1} parent=63 // pred_check
          %p2454 = pneg %p281
        $region78: #{lenet_forward.1} parent=63 // pred_check_branch
          %2456 = sbr.rel (%p2454) target = $region80
        $region79: #{lenet_forward.1} parent=63 // pred_region
          %s2458 = ssub.s32 16, 16
          %2459 = vsyncadd %s2451, %s2458
          %s2460 = smul.addr %s27, 16
          %s2461 = scalar_lea.hbm %s11, %s2460
          %s2463 = sshll.u32 %s2453, 4
          %s2464 = int_to_ptr.vmem [resolvable:$true] %s2463
          %2466 = dma.vmem_to_hbm [thread:$0]  %s2464, 16, %s2461, %s2451
        $region80: #{lenet_forward.1} parent=63 // pred_fallthru
          _
      $region64: #{lenet_forward.1} parent=5 // pred_fallthru
        _
      %p2467 = scmp.le.s32.totalorder 2, %s22
      // Predicated region
      $region81: #{lenet_forward.1} parent=5 // pred_check
        %p2468 = pneg %p2467
      $region82: #{lenet_forward.1} parent=5 // pred_check_branch
        %2470 = sbr.rel (%p2468) target = $region84
      $region83: #{lenet_forward.1} parent=5 // pred_region
        %s2471 = ssub.s32 %s22, 2
        // Predicated region
        $region85: #{lenet_forward.1} parent=83 // pred_check
          %p2472 = pneg %p287
        $region86: #{lenet_forward.1} parent=83 // pred_check_branch
          %2474 = sbr.rel (%p2472) target = $region88
        $region87: #{lenet_forward.1} parent=83 // pred_region
          %s2475 = sand.u32 %s272, 1
          %s2476 = scalar_lea.sflag [#allocation7], %s2475
          %s2477 = sand.u32 %s272, 1
          %s2478 = scalar_lea.vmem [#allocation11], %s2477
          %2479 = dma.done %s2476, 16
        $region88: #{lenet_forward.1} parent=83 // pred_fallthru
          _
      $region84: #{lenet_forward.1} parent=5 // pred_fallthru
        _
    $region6: #{lenet_forward.1} parent=1 // loop_footer
      %s26 = sadd.s32 1, %s22
    $region7: #{lenet_forward.1} parent=1 // loop_footer_branch
      %21 = sbr.rel target = $region3
    $region8: #{lenet_forward.1} parent=1 // loop_exit
      _
    %2480 = vsyncpa [#allocation6], 1
    %s2481 = scalar_lea.sflag [#allocation6], 1
    %2482 = vsyncpa %s2481, 1
    %2483 = vsyncpa [#allocation9], 1
    %2484 = vsyncpa [#allocation7], 1
    %s2485 = scalar_lea.sflag [#allocation7], 1
    %2486 = vsyncpa %s2485, 1

</llo_original>
